<compile_context>
chip_gen: v5e
topology: v5e:2x2
jax: 0.10.0
libtpu: 0.0.40
codegen_flags: <defaults>
</compile_context>

<pallas_src>
import functools

import jax
import jax.numpy as jnp
from jax.experimental import pallas as pl
from jax.experimental.pallas import tpu as pltpu

ENC_DIM = 32 * 7 * 14  # 3136, fixed by the module definition


def _mlp_softmax_kernel(n_images, n_classes,
                        xe_ref, xw_ref, w1e_ref, w1w_ref, b1_ref,
                        w2_ref, b2_ref, w3_ref, b3_ref, o_ref):
    # fc1: split matmul (encoding part + w_BWD part) replaces the concat.
    h1 = (jnp.dot(xe_ref[...], w1e_ref[...], preferred_element_type=jnp.float32)
          + jnp.dot(xw_ref[...], w1w_ref[...], preferred_element_type=jnp.float32)
          + b1_ref[...])
    h1 = jnp.maximum(h1, 0.0).astype(jnp.bfloat16)
    # fc2 + relu
    h2 = jnp.dot(h1, w2_ref[...], preferred_element_type=jnp.float32) + b2_ref[...]
    h2 = jnp.maximum(h2, 0.0).astype(jnp.bfloat16)
    # fc3: logits in flat layout [bt, n_images*n_classes]
    h3 = jnp.dot(h2, w3_ref[...], preferred_element_type=jnp.float32) + b3_ref[...]

    # Softmax over the n_images axis: flat column i*n_classes + c holds
    # (image i, class c), so reduce across the n_images static slices and
    # write each normalized slice directly into the output ref.
    cols = [h3[:, i * n_classes:(i + 1) * n_classes] for i in range(n_images)]
    m = cols[0]
    for c in cols[1:]:
        m = jnp.maximum(m, c)
    exps = [jnp.exp(c - m) for c in cols]
    denom = exps[0]
    for e in exps[1:]:
        denom = denom + e
    inv = pl.reciprocal(denom, approx=True)  # EUP slot, off the VALU
    for i, e in enumerate(exps):
        o_ref[:, i * n_classes:(i + 1) * n_classes] = (e * inv).astype(o_ref.dtype)


def entangled_diffusion_classifier(w_BWD, x_encoding, params, n_images,
                                   n_classes, block_b=512):
    B = x_encoding.shape[0]
    d_enc = x_encoding.shape[1]
    d_w = n_images * (n_classes + 1)
    flat_out = n_images * n_classes

    w1, b1, w2, b2, w3, b3 = params
    # Split fc1's weight at the encoding / w_BWD boundary (static slice) so
    # the kernel never needs the concatenated [B, d_enc + d_w] activation.
    w1_enc = w1[:d_enc].astype(jnp.bfloat16)
    w1_w = w1[d_enc:].astype(jnp.bfloat16)
    w2b = w2.astype(jnp.bfloat16)
    w3b = w3.astype(jnp.bfloat16)
    b1f = b1.astype(jnp.float32)
    b2f = b2.astype(jnp.float32)
    b3f = b3.astype(jnp.float32)

    # bf16 activations halve HBM traffic; ideally the producer already emits
    # bf16 — the casts here are no-ops in that case.
    x_enc = x_encoding.astype(jnp.bfloat16)
    w_flat = w_BWD.reshape(B, d_w).astype(jnp.bfloat16)

    # Batch tile: multiple of 8 (sublane), capped at block_b; pad B so every
    # grid step is a full block (padded rows are sliced off afterwards).
    bt = min(block_b, pl.cdiv(B, 8) * 8)
    Bp = pl.cdiv(B, bt) * bt
    if Bp != B:
        pad = Bp - B
        x_enc = jnp.pad(x_enc, ((0, pad), (0, 0)))
        w_flat = jnp.pad(w_flat, ((0, pad), (0, 0)))

    def resident(a):
        return pl.BlockSpec(a.shape, lambda i: (0, 0))

    cost = pl.CostEstimate(
        flops=2 * Bp * (d_enc * 128 + d_w * 128 + 128 * 64 + 64 * flat_out),
        transcendentals=Bp * flat_out,
        bytes_accessed=(Bp * (d_enc + d_w) * 2          # bf16 activations in
                        + Bp * flat_out * 4             # f32 probs out
                        + ((d_enc + d_w) * 128 + 128 * 64 + 64 * flat_out) * 2
                        + (128 + 64 + flat_out) * 4),   # biases
    )

    kernel = functools.partial(_mlp_softmax_kernel, n_images, n_classes)
    out_flat = pl.pallas_call(
        kernel,
        out_shape=jax.ShapeDtypeStruct((Bp, flat_out), jnp.float32),
        grid=(Bp // bt,),
        in_specs=[
            pl.BlockSpec((bt, d_enc), lambda i: (i, 0)),
            pl.BlockSpec((bt, d_w), lambda i: (i, 0)),
            resident(w1_enc), resident(w1_w), resident(b1f),
            resident(w2b), resident(b2f), resident(w3b), resident(b3f),
        ],
        out_specs=pl.BlockSpec((bt, flat_out), lambda i: (i, 0)),
        compiler_params=pltpu.CompilerParams(
            dimension_semantics=("parallel",)),
        cost_estimate=cost,
    )(x_enc, w_flat, w1_enc, w1_w, b1f, w2b, b2f, w3b, b3f)

    return out_flat[:B].reshape(B, n_images, n_classes)


def init_params(key, n_images, n_classes):
    """Deterministic PyTorch-Linear-style uniform init (no checkpoint load)."""
    d1 = ENC_DIM + n_images * (n_classes + 1)
    dims = [(d1, 128), (128, 64), (64, n_images * n_classes)]
    params = []
    for i, (din, dout) in enumerate(dims):
        kw, kb = jax.random.split(jax.random.fold_in(key, i))
        bound = 1.0 / (din ** 0.5)
        w = jax.random.uniform(kw, (din, dout), jnp.float32, -bound, bound)
        b = jax.random.uniform(kb, (1, dout), jnp.float32, -bound, bound)
        params += [w, b]
    return params


def _reference(w_BWD, x_encoding, params, n_images, n_classes):
    """Pure-JAX f32 forward for a loose sanity check."""
    w1, b1, w2, b2, w3, b3 = params
    x = jnp.concatenate(
        [x_encoding, w_BWD.reshape(x_encoding.shape[0], -1)], axis=-1)
    h1 = jnp.maximum(x @ w1 + b1, 0.0)
    h2 = jnp.maximum(h1 @ w2 + b2, 0.0)
    h3 = (h2 @ w3 + b3).reshape(-1, n_images, n_classes)
    return jax.nn.softmax(h3, axis=1)


if __name__ == "__main__":
    key = jax.random.PRNGKey(0)
    n_images, n_classes = 2, 4
    B = 2

    k1, k2, k3 = jax.random.split(key, 3)
    w_BWD = jax.random.normal(k1, (B, n_images, n_classes + 1), jnp.float32)
    x_encoding = jax.random.normal(k2, (B, ENC_DIM), jnp.float32)
    params = init_params(k3, n_images, n_classes)

    out = entangled_diffusion_classifier(w_BWD, x_encoding, params,
                                         n_images, n_classes)
    out = jax.block_until_ready(out)

    assert out.shape == (B, n_images, n_classes)
    # softmax over the image axis (dim=1) must sum to ~1 per (batch, class)
    sums = jnp.sum(out, axis=1)
    assert bool(jnp.allclose(sums, 1.0, atol=1e-2)), sums
    # loose comparison vs f32 reference (kernel uses bf16 MXU inputs)
    ref = _reference(w_BWD, x_encoding, params, n_images, n_classes)
    assert bool(jnp.allclose(out, ref, atol=5e-2)), jnp.max(jnp.abs(out - ref))
    print("KERNEL_OK")
</pallas_src>

<mosaic_0001>
module attributes {stable_mosaic.version = 11 : i64} {
  func.func @_mlp_softmax_kernel(%arg0: i32, %arg1: memref<8x3136xbf16, #tpu.memory_space<vmem>>, %arg2: memref<8x10xbf16, #tpu.memory_space<vmem>>, %arg3: memref<3136x128xbf16, #tpu.memory_space<vmem>>, %arg4: memref<10x128xbf16, #tpu.memory_space<vmem>>, %arg5: memref<1x128xf32, #tpu.memory_space<vmem>>, %arg6: memref<128x64xbf16, #tpu.memory_space<vmem>>, %arg7: memref<1x64xf32, #tpu.memory_space<vmem>>, %arg8: memref<64x8xbf16, #tpu.memory_space<vmem>>, %arg9: memref<1x8xf32, #tpu.memory_space<vmem>>, %arg10: memref<8x8xf32, #tpu.memory_space<vmem>>) attributes {dimension_semantics = [#tpu.dimension_semantics<parallel>], iteration_bounds = array<i64: 1>, scalar_prefetch = 0 : i64, scratch_operands = 0 : i64, tpu.core_type = #tpu.core_type<tc>, window_params = [{transform_indices = @transform_0, window_bounds = array<i64: 8, 3136>}, {transform_indices = @transform_1, window_bounds = array<i64: 8, 10>}, {pipeline_mode = #tpu.pipeline_mode<synchronous>, transform_indices = @transform_2, window_bounds = array<i64: 3136, 128>}, {pipeline_mode = #tpu.pipeline_mode<synchronous>, transform_indices = @transform_3, window_bounds = array<i64: 10, 128>}, {pipeline_mode = #tpu.pipeline_mode<synchronous>, transform_indices = @transform_4, window_bounds = array<i64: 1, 128>}, {pipeline_mode = #tpu.pipeline_mode<synchronous>, transform_indices = @transform_5, window_bounds = array<i64: 128, 64>}, {pipeline_mode = #tpu.pipeline_mode<synchronous>, transform_indices = @transform_6, window_bounds = array<i64: 1, 64>}, {pipeline_mode = #tpu.pipeline_mode<synchronous>, transform_indices = @transform_7, window_bounds = array<i64: 64, 8>}, {pipeline_mode = #tpu.pipeline_mode<synchronous>, transform_indices = @transform_8, window_bounds = array<i64: 1, 8>}, {transform_indices = @transform_9, window_bounds = array<i64: 8, 8>}]} {
    %c0 = arith.constant 0 : index
    %c0_0 = arith.constant 0 : index
    %0 = vector.load %arg1[%c0, %c0_0] : memref<8x3136xbf16, #tpu.memory_space<vmem>>, vector<8x3136xbf16>
    %c0_1 = arith.constant 0 : index
    %c0_2 = arith.constant 0 : index
    %1 = vector.load %arg3[%c0_1, %c0_2] : memref<3136x128xbf16, #tpu.memory_space<vmem>>, vector<3136x128xbf16>
    %cst = arith.constant dense<0.000000e+00> : vector<8x128xf32>
    %2 = tpu.matmul %0, %1, %cst {dimension_numbers = #tpu.dot_dimension_numbers<[1], [0], [0], [1], [0, 0, 1, 1], [], []>} : vector<8x3136xbf16>, vector<3136x128xbf16>, vector<8x128xf32> -> vector<8x128xf32>
    %c0_3 = arith.constant 0 : index
    %c0_4 = arith.constant 0 : index
    %3 = vector.load %arg2[%c0_3, %c0_4] : memref<8x10xbf16, #tpu.memory_space<vmem>>, vector<8x10xbf16>
    %c0_5 = arith.constant 0 : index
    %c0_6 = arith.constant 0 : index
    %4 = vector.load %arg4[%c0_5, %c0_6] : memref<10x128xbf16, #tpu.memory_space<vmem>>, vector<10x128xbf16>
    %cst_7 = arith.constant dense<0.000000e+00> : vector<8x128xf32>
    %5 = tpu.matmul %3, %4, %cst_7 {dimension_numbers = #tpu.dot_dimension_numbers<[1], [0], [0], [1], [0, 0, 1, 1], [], []>} : vector<8x10xbf16>, vector<10x128xbf16>, vector<8x128xf32> -> vector<8x128xf32>
    %6 = arith.addf %2, %5 : vector<8x128xf32>
    %c0_8 = arith.constant 0 : index
    %c0_9 = arith.constant 0 : index
    %7 = vector.load %arg5[%c0_8, %c0_9] : memref<1x128xf32, #tpu.memory_space<vmem>>, vector<1x128xf32>
    %8 = vector.broadcast %7 : vector<1x128xf32> to vector<8x128xf32>
    %9 = arith.addf %6, %8 : vector<8x128xf32>
    %cst_10 = arith.constant 0.000000e+00 : f32
    %10 = vector.broadcast %cst_10 : f32 to vector<8x128xf32>
    %11 = arith.maximumf %9, %10 : vector<8x128xf32>
    %12 = arith.truncf %11 : vector<8x128xf32> to vector<8x128xbf16>
    %c0_11 = arith.constant 0 : index
    %c0_12 = arith.constant 0 : index
    %13 = vector.load %arg6[%c0_11, %c0_12] : memref<128x64xbf16, #tpu.memory_space<vmem>>, vector<128x64xbf16>
    %cst_13 = arith.constant dense<0.000000e+00> : vector<8x64xf32>
    %14 = tpu.matmul %12, %13, %cst_13 {dimension_numbers = #tpu.dot_dimension_numbers<[1], [0], [0], [1], [0, 0, 1, 1], [], []>} : vector<8x128xbf16>, vector<128x64xbf16>, vector<8x64xf32> -> vector<8x64xf32>
    %c0_14 = arith.constant 0 : index
    %c0_15 = arith.constant 0 : index
    %15 = vector.load %arg7[%c0_14, %c0_15] : memref<1x64xf32, #tpu.memory_space<vmem>>, vector<1x64xf32>
    %16 = vector.broadcast %15 : vector<1x64xf32> to vector<8x64xf32>
    %17 = arith.addf %14, %16 : vector<8x64xf32>
    %cst_16 = arith.constant 0.000000e+00 : f32
    %18 = vector.broadcast %cst_16 : f32 to vector<8x64xf32>
    %19 = arith.maximumf %17, %18 : vector<8x64xf32>
    %20 = arith.truncf %19 : vector<8x64xf32> to vector<8x64xbf16>
    %c0_17 = arith.constant 0 : index
    %c0_18 = arith.constant 0 : index
    %21 = vector.load %arg8[%c0_17, %c0_18] : memref<64x8xbf16, #tpu.memory_space<vmem>>, vector<64x8xbf16>
    %cst_19 = arith.constant dense<0.000000e+00> : vector<8x8xf32>
    %22 = tpu.matmul %20, %21, %cst_19 {dimension_numbers = #tpu.dot_dimension_numbers<[1], [0], [0], [1], [0, 0, 1, 1], [], []>} : vector<8x64xbf16>, vector<64x8xbf16>, vector<8x8xf32> -> vector<8x8xf32>
    %c0_20 = arith.constant 0 : index
    %c0_21 = arith.constant 0 : index
    %23 = vector.load %arg9[%c0_20, %c0_21] : memref<1x8xf32, #tpu.memory_space<vmem>>, vector<1x8xf32>
    %24 = vector.broadcast %23 : vector<1x8xf32> to vector<8x8xf32>
    %25 = arith.addf %22, %24 : vector<8x8xf32>
    %26 = vector.extract_strided_slice %25 {offsets = [0, 0], sizes = [8, 4], strides = [1, 1]} : vector<8x8xf32> to vector<8x4xf32>
    %27 = vector.extract_strided_slice %25 {offsets = [0, 4], sizes = [8, 4], strides = [1, 1]} : vector<8x8xf32> to vector<8x4xf32>
    %28 = arith.maximumf %26, %27 : vector<8x4xf32>
    %29 = arith.subf %26, %28 : vector<8x4xf32>
    %30 = math.exp %29 : vector<8x4xf32>
    %31 = arith.subf %27, %28 : vector<8x4xf32>
    %32 = math.exp %31 : vector<8x4xf32>
    %33 = arith.addf %30, %32 : vector<8x4xf32>
    %34 = tpu.reciprocal %33 {approx = true} : vector<8x4xf32> -> vector<8x4xf32>
    %35 = arith.mulf %30, %34 : vector<8x4xf32>
    %c0_22 = arith.constant 0 : index
    %c0_23 = arith.constant 0 : index
    %36 = vector.load %arg10[%c0_22, %c0_23] : memref<8x8xf32, #tpu.memory_space<vmem>>, vector<8x4xf32>
    tpu.vector_store %arg10[%c0_22, %c0_23], %35 {strides = array<i32>} : memref<8x8xf32, #tpu.memory_space<vmem>>, vector<8x4xf32>,
    %37 = arith.mulf %32, %34 : vector<8x4xf32>
    %c0_24 = arith.constant 0 : index
    %c4 = arith.constant 4 : index
    %38 = vector.load %arg10[%c0_24, %c4] : memref<8x8xf32, #tpu.memory_space<vmem>>, vector<8x4xf32>
    tpu.vector_store %arg10[%c0_24, %c4], %37 {strides = array<i32>} : memref<8x8xf32, #tpu.memory_space<vmem>>, vector<8x4xf32>,
    return
  }
  func.func @transform_0(%arg0: i32) -> (i32, i32) {
    %c0_i32 = arith.constant 0 : i32
    %c0_i32_0 = arith.constant 0 : i32
    return %arg0, %c0_i32 : i32, i32
  }
  func.func @transform_1(%arg0: i32) -> (i32, i32) {
    %c0_i32 = arith.constant 0 : i32
    %c0_i32_0 = arith.constant 0 : i32
    return %arg0, %c0_i32 : i32, i32
  }
  func.func @transform_2(%arg0: i32) -> (i32, i32) {
    %c0_i32 = arith.constant 0 : i32
    %c0_i32_0 = arith.constant 0 : i32
    %c0_i32_1 = arith.constant 0 : i32
    return %c0_i32, %c0_i32_0 : i32, i32
  }
  func.func @transform_3(%arg0: i32) -> (i32, i32) {
    %c0_i32 = arith.constant 0 : i32
    %c0_i32_0 = arith.constant 0 : i32
    %c0_i32_1 = arith.constant 0 : i32
    return %c0_i32, %c0_i32_0 : i32, i32
  }
  func.func @transform_4(%arg0: i32) -> (i32, i32) {
    %c0_i32 = arith.constant 0 : i32
    %c0_i32_0 = arith.constant 0 : i32
    %c0_i32_1 = arith.constant 0 : i32
    return %c0_i32, %c0_i32_0 : i32, i32
  }
  func.func @transform_5(%arg0: i32) -> (i32, i32) {
    %c0_i32 = arith.constant 0 : i32
    %c0_i32_0 = arith.constant 0 : i32
    %c0_i32_1 = arith.constant 0 : i32
    return %c0_i32, %c0_i32_0 : i32, i32
  }
  func.func @transform_6(%arg0: i32) -> (i32, i32) {
    %c0_i32 = arith.constant 0 : i32
    %c0_i32_0 = arith.constant 0 : i32
    %c0_i32_1 = arith.constant 0 : i32
    return %c0_i32, %c0_i32_0 : i32, i32
  }
  func.func @transform_7(%arg0: i32) -> (i32, i32) {
    %c0_i32 = arith.constant 0 : i32
    %c0_i32_0 = arith.constant 0 : i32
    %c0_i32_1 = arith.constant 0 : i32
    return %c0_i32, %c0_i32_0 : i32, i32
  }
  func.func @transform_8(%arg0: i32) -> (i32, i32) {
    %c0_i32 = arith.constant 0 : i32
    %c0_i32_0 = arith.constant 0 : i32
    %c0_i32_1 = arith.constant 0 : i32
    return %c0_i32, %c0_i32_0 : i32, i32
  }
  func.func @transform_9(%arg0: i32) -> (i32, i32) {
    %c0_i32 = arith.constant 0 : i32
    %c0_i32_0 = arith.constant 0 : i32
    return %arg0, %c0_i32 : i32, i32
  }
}

</mosaic_0001>

<llo_original>
// kernel: tpu_custom_call.1
$region0: #{tpu_custom_call.1}
  #allocation0 [shape = 'u32[]', space=smem, size = 0x4, offset = 0x4, fixed_abs, tag = 'smem constant byte address 0x4 - core index']
  #allocation1 [shape = 'u32[72,128]{1,0:T(1,128)}', space=vmem, size = 0x9000, scoped, tag = 'internal scratch']
  %s0 = inlined_call_operand.vmem [shape: bf16[8,3136], index: 0, kind: input, shape index: {}]
  %s1 = inlined_call_operand.vmem [shape: bf16[8,10], index: 1, kind: input, shape index: {}]
  %s2 = inlined_call_operand.hbm [shape: bf16[3136,128], index: 2, kind: input, shape index: {}]
  %s3 = inlined_call_operand.hbm [shape: bf16[10,128], index: 3, kind: input, shape index: {}]
  %s4 = inlined_call_operand.hbm [shape: f32[1,128], index: 4, kind: input, shape index: {}]
  %s5 = inlined_call_operand.vmem [shape: bf16[128,64], index: 5, kind: input, shape index: {}]
  %s6 = inlined_call_operand.vmem [shape: f32[1,64], index: 6, kind: input, shape index: {}]
  %s7 = inlined_call_operand.vmem [shape: bf16[64,8], index: 7, kind: input, shape index: {}]
  %s8 = inlined_call_operand.vmem [shape: f32[1,8], index: 8, kind: input, shape index: {}]
  %s9 = inlined_call_operand.hbm [shape: f32[8,8], index: 9, kind: output, shape index: {}]
  %s10 = sld [smem:[#allocation0]]
  $region58: #{tpu_custom_call.1} parent=0
    _
  %s12 = ssub.s32 1, %s10
  %s13 = scalar_select 0, %s12, %s10
  $region1: #{tpu_custom_call.1} parent=0
    #allocation2 [shape = 'u8[802816]{0}', space=vmem, size = 0xc4000, scoped, tag = 'input window, operand 2, single buffered']
    #allocation3 [shape = 's32[1]{0}', space=sflag, size = 0x4, scoped, tag = 'scoped memory for tpu_custom_call.1']
    #allocation4 [shape = 's32[1]{0}', space=sflag, size = 0x4, scoped, tag = 'scoped memory for tpu_custom_call.1']
    #allocation5 [shape = 'u8[4096]{0}', space=vmem, size = 0x1000, scoped, tag = 'input window, operand 3, single buffered']
    #allocation6 [shape = 's32[1]{0}', space=sflag, size = 0x4, scoped, tag = 'scoped memory for tpu_custom_call.1']
    #allocation7 [shape = 'u8[512]{0}', space=vmem, size = 0x400, scoped, tag = 'input window, operand 4, single buffered']
    #allocation8 [shape = 'u8[4096]{0}', space=vmem, size = 0x1000, scoped, tag = 'output window, operand 0, single buffered']
    %14 = vsyncpa [#allocation3], 0
    %15 = vsyncpa [#allocation6], 0
    %16 = vsyncpa [#allocation4], 0
    // Predicated region
    $region2: #{tpu_custom_call.1} parent=1 // pred_check
      _
    $region3: #{tpu_custom_call.1} parent=1 // pred_check_branch
      %18 = sbr.rel (0) target = $region5
    $region4: #{tpu_custom_call.1} parent=1 // pred_region
      _
    $region5: #{tpu_custom_call.1} parent=1 // pred_fallthru
      _
    // Predicated region
    $region6: #{tpu_custom_call.1} parent=1 // pred_check
      _
    $region7: #{tpu_custom_call.1} parent=1 // pred_check_branch
      %20 = sbr.rel (0) target = $region9
    $region8: #{tpu_custom_call.1} parent=1 // pred_region
      _
    $region9: #{tpu_custom_call.1} parent=1 // pred_fallthru
      _
    // Predicated region
    $region10: #{tpu_custom_call.1} parent=1 // pred_check
      _
    $region11: #{tpu_custom_call.1} parent=1 // pred_check_branch
      %22 = sbr.rel (0) target = $region13
    $region12: #{tpu_custom_call.1} parent=1 // pred_region
      %24 = vsyncadd [#allocation3], 0
      %s25 = sshll.u32 %s2, 4
      %s26 = int_to_ptr.hbm [resolvable:$true] %s25
      %s27 = sshll.u32 [#allocation2], 4
      %s28 = int_to_ptr.vmem [resolvable:$true] %s27
      %33 = dma.hbm_to_vmem [thread:$0]  %s26, 25088, %s28, [#allocation3], 64, 64, 4
    $region13: #{tpu_custom_call.1} parent=1 // pred_fallthru
      _
    // Predicated region
    $region14: #{tpu_custom_call.1} parent=1 // pred_check
      _
    $region15: #{tpu_custom_call.1} parent=1 // pred_check_branch
      %35 = sbr.rel (0) target = $region17
    $region16: #{tpu_custom_call.1} parent=1 // pred_region
      %37 = vsyncadd [#allocation6], 0
      %s38 = sshll.u32 %s3, 4
      %s39 = int_to_ptr.hbm [resolvable:$true] %s38
      %s40 = sshll.u32 [#allocation5], 4
      %s41 = int_to_ptr.vmem [resolvable:$true] %s40
      %46 = dma.hbm_to_vmem [thread:$0]  %s39, 128, %s41, [#allocation6], 64, 64, 4
    $region17: #{tpu_custom_call.1} parent=1 // pred_fallthru
      _
    // Predicated region
    $region18: #{tpu_custom_call.1} parent=1 // pred_check
      _
    $region19: #{tpu_custom_call.1} parent=1 // pred_check_branch
      %48 = sbr.rel (0) target = $region21
    $region20: #{tpu_custom_call.1} parent=1 // pred_region
      %50 = vsyncadd [#allocation6], 0
      %s52 = sshll.u32 %s4, 4
      %s53 = int_to_ptr.hbm [resolvable:$true] %s52
      %s54 = sshll.u32 [#allocation7], 4
      %s55 = int_to_ptr.vmem [resolvable:$true] %s54
      %57 = dma.hbm_to_vmem [thread:$0]  %s53, 16, %s55, [#allocation6]
    $region21: #{tpu_custom_call.1} parent=1 // pred_fallthru
      _
    // Predicated region
    $region22: #{tpu_custom_call.1} parent=1 // pred_check
      _
    $region23: #{tpu_custom_call.1} parent=1 // pred_check_branch
      %59 = sbr.rel (0) target = $region25
    $region24: #{tpu_custom_call.1} parent=1 // pred_region
      _
    $region25: #{tpu_custom_call.1} parent=1 // pred_fallthru
      _
    // Predicated region
    $region26: #{tpu_custom_call.1} parent=1 // pred_check
      _
    $region27: #{tpu_custom_call.1} parent=1 // pred_check_branch
      %61 = sbr.rel (0) target = $region29
    $region28: #{tpu_custom_call.1} parent=1 // pred_region
      _
    $region29: #{tpu_custom_call.1} parent=1 // pred_fallthru
      _
    // Predicated region
    $region30: #{tpu_custom_call.1} parent=1 // pred_check
      _
    $region31: #{tpu_custom_call.1} parent=1 // pred_check_branch
      %63 = sbr.rel (0) target = $region33
    $region32: #{tpu_custom_call.1} parent=1 // pred_region
      _
    $region33: #{tpu_custom_call.1} parent=1 // pred_fallthru
      _
    // Predicated region
    $region34: #{tpu_custom_call.1} parent=1 // pred_check
      _
    $region35: #{tpu_custom_call.1} parent=1 // pred_check_branch
      %65 = sbr.rel (0) target = $region37
    $region36: #{tpu_custom_call.1} parent=1 // pred_region
      _
    $region37: #{tpu_custom_call.1} parent=1 // pred_fallthru
      _
    // Predicated region
    $region38: #{tpu_custom_call.1} parent=1 // pred_check
      _
    $region39: #{tpu_custom_call.1} parent=1 // pred_check_branch
      %67 = sbr.rel (0) target = $region41
    $region40: #{tpu_custom_call.1} parent=1 // pred_region
      %69 = dma.done [#allocation3], 25088
    $region41: #{tpu_custom_call.1} parent=1 // pred_fallthru
      _
    // Predicated region
    $region42: #{tpu_custom_call.1} parent=1 // pred_check
      _
    $region43: #{tpu_custom_call.1} parent=1 // pred_check_branch
      %71 = sbr.rel (0) target = $region45
    $region44: #{tpu_custom_call.1} parent=1 // pred_region
      %73 = dma.done [#allocation6], 128
    $region45: #{tpu_custom_call.1} parent=1 // pred_fallthru
      _
    // Predicated region
    $region46: #{tpu_custom_call.1} parent=1 // pred_check
      _
    $region47: #{tpu_custom_call.1} parent=1 // pred_check_branch
      %75 = sbr.rel (0) target = $region49
    $region48: #{tpu_custom_call.1} parent=1 // pred_region
      %77 = dma.done [#allocation6], 16
    $region49: #{tpu_custom_call.1} parent=1 // pred_fallthru
      _
    %v79 = vld [vmem:[%s0] sm:$0xff]
    %v80 = vld [vmem:[%s0 + $0x8] sm:$0xff]
    %v81 = vld [vmem:[%s0 + $0x10] sm:$0xff]
    %v82 = vld [vmem:[%s0 + $0x18] sm:$0xff]
    %v83 = vld [vmem:[%s0 + $0x20] sm:$0xff]
    %v84 = vld [vmem:[%s0 + $0x28] sm:$0xff]
    %v85 = vld [vmem:[%s0 + $0x30] sm:$0xff]
    %v86 = vld [vmem:[%s0 + $0x38] sm:$0xff]
    %v87 = vld [vmem:[%s0 + $0x40] sm:$0xff]
    %v88 = vld [vmem:[%s0 + $0x48] sm:$0xff]
    %v89 = vld [vmem:[%s0 + $0x50] sm:$0xff]
    %v90 = vld [vmem:[%s0 + $0x58] sm:$0xff]
    %v91 = vld [vmem:[%s0 + $0x60] sm:$0xf]
    %v92 = vld [vmem:[#allocation2] sm:$0xf]
    %v93 = vld [vmem:[#allocation2 + $0x4] sm:$0xf]
    %v94 = vld [vmem:[#allocation2 + $0x8] sm:$0xf]
    %v95 = vld [vmem:[#allocation2 + $0xc] sm:$0xf]
    %v96 = vld [vmem:[#allocation2 + $0x10] sm:$0xf]
    %v97 = vld [vmem:[#allocation2 + $0x14] sm:$0xf]
    %v98 = vld [vmem:[#allocation2 + $0x18] sm:$0xf]
    %v99 = vld [vmem:[#allocation2 + $0x1c] sm:$0xf]
    %v100 = vld [vmem:[#allocation2 + $0x20] sm:$0xf]
    %v101 = vld [vmem:[#allocation2 + $0x24] sm:$0xf]
    %v102 = vld [vmem:[#allocation2 + $0x28] sm:$0xf]
    %v103 = vld [vmem:[#allocation2 + $0x2c] sm:$0xf]
    %v104 = vld [vmem:[#allocation2 + $0x30] sm:$0xf]
    %v105 = vld [vmem:[#allocation2 + $0x34] sm:$0xf]
    %v106 = vld [vmem:[#allocation2 + $0x38] sm:$0xf]
    %v107 = vld [vmem:[#allocation2 + $0x3c] sm:$0xf]
    %v108 = vld [vmem:[#allocation2 + $0x40] sm:$0xf]
    %v109 = vld [vmem:[#allocation2 + $0x44] sm:$0xf]
    %v110 = vld [vmem:[#allocation2 + $0x48] sm:$0xf]
    %v111 = vld [vmem:[#allocation2 + $0x4c] sm:$0xf]
    %v112 = vld [vmem:[#allocation2 + $0x50] sm:$0xf]
    %v113 = vld [vmem:[#allocation2 + $0x54] sm:$0xf]
    %v114 = vld [vmem:[#allocation2 + $0x58] sm:$0xf]
    %v115 = vld [vmem:[#allocation2 + $0x5c] sm:$0xf]
    %v116 = vld [vmem:[#allocation2 + $0x60] sm:$0xf]
    %v117 = vld [vmem:[#allocation2 + $0x64] sm:$0xf]
    %v118 = vld [vmem:[#allocation2 + $0x68] sm:$0xf]
    %v119 = vld [vmem:[#allocation2 + $0x6c] sm:$0xf]
    %v120 = vld [vmem:[#allocation2 + $0x70] sm:$0xf]
    %v121 = vld [vmem:[#allocation2 + $0x74] sm:$0xf]
    %v122 = vld [vmem:[#allocation2 + $0x78] sm:$0xf]
    %v123 = vld [vmem:[#allocation2 + $0x7c] sm:$0xf]
    %v124 = vld [vmem:[#allocation2 + $0x80] sm:$0xf]
    %v125 = vld [vmem:[#allocation2 + $0x84] sm:$0xf]
    %v126 = vld [vmem:[#allocation2 + $0x88] sm:$0xf]
    %v127 = vld [vmem:[#allocation2 + $0x8c] sm:$0xf]
    %v128 = vld [vmem:[#allocation2 + $0x90] sm:$0xf]
    %v129 = vld [vmem:[#allocation2 + $0x94] sm:$0xf]
    %v130 = vld [vmem:[#allocation2 + $0x98] sm:$0xf]
    %v131 = vld [vmem:[#allocation2 + $0x9c] sm:$0xf]
    %v132 = vld [vmem:[#allocation2 + $0xa0] sm:$0xf]
    %v133 = vld [vmem:[#allocation2 + $0xa4] sm:$0xf]
    %v134 = vld [vmem:[#allocation2 + $0xa8] sm:$0xf]
    %v135 = vld [vmem:[#allocation2 + $0xac] sm:$0xf]
    %v136 = vld [vmem:[#allocation2 + $0xb0] sm:$0xf]
    %v137 = vld [vmem:[#allocation2 + $0xb4] sm:$0xf]
    %v138 = vld [vmem:[#allocation2 + $0xb8] sm:$0xf]
    %v139 = vld [vmem:[#allocation2 + $0xbc] sm:$0xf]
    %v140 = vld [vmem:[#allocation2 + $0xc0] sm:$0xf]
    %v141 = vld [vmem:[#allocation2 + $0xc4] sm:$0xf]
    %v142 = vld [vmem:[#allocation2 + $0xc8] sm:$0xf]
    %v143 = vld [vmem:[#allocation2 + $0xcc] sm:$0xf]
    %v144 = vld [vmem:[#allocation2 + $0xd0] sm:$0xf]
    %v145 = vld [vmem:[#allocation2 + $0xd4] sm:$0xf]
    %v146 = vld [vmem:[#allocation2 + $0xd8] sm:$0xf]
    %v147 = vld [vmem:[#allocation2 + $0xdc] sm:$0xf]
    %v148 = vld [vmem:[#allocation2 + $0xe0] sm:$0xf]
    %v149 = vld [vmem:[#allocation2 + $0xe4] sm:$0xf]
    %v150 = vld [vmem:[#allocation2 + $0xe8] sm:$0xf]
    %v151 = vld [vmem:[#allocation2 + $0xec] sm:$0xf]
    %v152 = vld [vmem:[#allocation2 + $0xf0] sm:$0xf]
    %v153 = vld [vmem:[#allocation2 + $0xf4] sm:$0xf]
    %v154 = vld [vmem:[#allocation2 + $0xf8] sm:$0xf]
    %v155 = vld [vmem:[#allocation2 + $0xfc] sm:$0xf]
    %v156 = vld [vmem:[#allocation2 + $0x100] sm:$0xf]
    %v157 = vld [vmem:[#allocation2 + $0x104] sm:$0xf]
    %v158 = vld [vmem:[#allocation2 + $0x108] sm:$0xf]
    %v159 = vld [vmem:[#allocation2 + $0x10c] sm:$0xf]
    %v160 = vld [vmem:[#allocation2 + $0x110] sm:$0xf]
    %v161 = vld [vmem:[#allocation2 + $0x114] sm:$0xf]
    %v162 = vld [vmem:[#allocation2 + $0x118] sm:$0xf]
    %v163 = vld [vmem:[#allocation2 + $0x11c] sm:$0xf]
    %v164 = vld [vmem:[#allocation2 + $0x120] sm:$0xf]
    %v165 = vld [vmem:[#allocation2 + $0x124] sm:$0xf]
    %v166 = vld [vmem:[#allocation2 + $0x128] sm:$0xf]
    %v167 = vld [vmem:[#allocation2 + $0x12c] sm:$0xf]
    %v168 = vld [vmem:[#allocation2 + $0x130] sm:$0xf]
    %v169 = vld [vmem:[#allocation2 + $0x134] sm:$0xf]
    %v170 = vld [vmem:[#allocation2 + $0x138] sm:$0xf]
    %v171 = vld [vmem:[#allocation2 + $0x13c] sm:$0xf]
    %v172 = vld [vmem:[#allocation2 + $0x140] sm:$0xf]
    %v173 = vld [vmem:[#allocation2 + $0x144] sm:$0xf]
    %v174 = vld [vmem:[#allocation2 + $0x148] sm:$0xf]
    %v175 = vld [vmem:[#allocation2 + $0x14c] sm:$0xf]
    %v176 = vld [vmem:[#allocation2 + $0x150] sm:$0xf]
    %v177 = vld [vmem:[#allocation2 + $0x154] sm:$0xf]
    %v178 = vld [vmem:[#allocation2 + $0x158] sm:$0xf]
    %v179 = vld [vmem:[#allocation2 + $0x15c] sm:$0xf]
    %v180 = vld [vmem:[#allocation2 + $0x160] sm:$0xf]
    %v181 = vld [vmem:[#allocation2 + $0x164] sm:$0xf]
    %v182 = vld [vmem:[#allocation2 + $0x168] sm:$0xf]
    %v183 = vld [vmem:[#allocation2 + $0x16c] sm:$0xf]
    %v184 = vld [vmem:[#allocation2 + $0x170] sm:$0xf]
    %v185 = vld [vmem:[#allocation2 + $0x174] sm:$0xf]
    %v186 = vld [vmem:[#allocation2 + $0x178] sm:$0xf]
    %v187 = vld [vmem:[#allocation2 + $0x17c] sm:$0xf]
    %v188 = vld [vmem:[#allocation2 + $0x180] sm:$0xf]
    %v189 = vld [vmem:[#allocation2 + $0x184] sm:$0xf]
    %v190 = vld [vmem:[#allocation2 + $0x188] sm:$0xf]
    %v191 = vld [vmem:[#allocation2 + $0x18c] sm:$0xf]
    %v192 = vld [vmem:[#allocation2 + $0x190] sm:$0xf]
    %v193 = vld [vmem:[#allocation2 + $0x194] sm:$0xf]
    %v194 = vld [vmem:[#allocation2 + $0x198] sm:$0xf]
    %v195 = vld [vmem:[#allocation2 + $0x19c] sm:$0xf]
    %v196 = vld [vmem:[#allocation2 + $0x1a0] sm:$0xf]
    %v197 = vld [vmem:[#allocation2 + $0x1a4] sm:$0xf]
    %v198 = vld [vmem:[#allocation2 + $0x1a8] sm:$0xf]
    %v199 = vld [vmem:[#allocation2 + $0x1ac] sm:$0xf]
    %v200 = vld [vmem:[#allocation2 + $0x1b0] sm:$0xf]
    %v201 = vld [vmem:[#allocation2 + $0x1b4] sm:$0xf]
    %v202 = vld [vmem:[#allocation2 + $0x1b8] sm:$0xf]
    %v203 = vld [vmem:[#allocation2 + $0x1bc] sm:$0xf]
    %v204 = vld [vmem:[#allocation2 + $0x1c0] sm:$0xf]
    %v205 = vld [vmem:[#allocation2 + $0x1c4] sm:$0xf]
    %v206 = vld [vmem:[#allocation2 + $0x1c8] sm:$0xf]
    %v207 = vld [vmem:[#allocation2 + $0x1cc] sm:$0xf]
    %v208 = vld [vmem:[#allocation2 + $0x1d0] sm:$0xf]
    %v209 = vld [vmem:[#allocation2 + $0x1d4] sm:$0xf]
    %v210 = vld [vmem:[#allocation2 + $0x1d8] sm:$0xf]
    %v211 = vld [vmem:[#allocation2 + $0x1dc] sm:$0xf]
    %v212 = vld [vmem:[#allocation2 + $0x1e0] sm:$0xf]
    %v213 = vld [vmem:[#allocation2 + $0x1e4] sm:$0xf]
    %v214 = vld [vmem:[#allocation2 + $0x1e8] sm:$0xf]
    %v215 = vld [vmem:[#allocation2 + $0x1ec] sm:$0xf]
    %v216 = vld [vmem:[#allocation2 + $0x1f0] sm:$0xf]
    %v217 = vld [vmem:[#allocation2 + $0x1f4] sm:$0xf]
    %v218 = vld [vmem:[#allocation2 + $0x1f8] sm:$0xf]
    %v219 = vld [vmem:[#allocation2 + $0x1fc] sm:$0xf]
    %v220 = vld [vmem:[#allocation2 + $0x200] sm:$0xf]
    %v221 = vld [vmem:[#allocation2 + $0x204] sm:$0xf]
    %v222 = vld [vmem:[#allocation2 + $0x208] sm:$0xf]
    %v223 = vld [vmem:[#allocation2 + $0x20c] sm:$0xf]
    %v224 = vld [vmem:[#allocation2 + $0x210] sm:$0xf]
    %v225 = vld [vmem:[#allocation2 + $0x214] sm:$0xf]
    %v226 = vld [vmem:[#allocation2 + $0x218] sm:$0xf]
    %v227 = vld [vmem:[#allocation2 + $0x21c] sm:$0xf]
    %v228 = vld [vmem:[#allocation2 + $0x220] sm:$0xf]
    %v229 = vld [vmem:[#allocation2 + $0x224] sm:$0xf]
    %v230 = vld [vmem:[#allocation2 + $0x228] sm:$0xf]
    %v231 = vld [vmem:[#allocation2 + $0x22c] sm:$0xf]
    %v232 = vld [vmem:[#allocation2 + $0x230] sm:$0xf]
    %v233 = vld [vmem:[#allocation2 + $0x234] sm:$0xf]
    %v234 = vld [vmem:[#allocation2 + $0x238] sm:$0xf]
    %v235 = vld [vmem:[#allocation2 + $0x23c] sm:$0xf]
    %v236 = vld [vmem:[#allocation2 + $0x240] sm:$0xf]
    %v237 = vld [vmem:[#allocation2 + $0x244] sm:$0xf]
    %v238 = vld [vmem:[#allocation2 + $0x248] sm:$0xf]
    %v239 = vld [vmem:[#allocation2 + $0x24c] sm:$0xf]
    %v240 = vld [vmem:[#allocation2 + $0x250] sm:$0xf]
    %v241 = vld [vmem:[#allocation2 + $0x254] sm:$0xf]
    %v242 = vld [vmem:[#allocation2 + $0x258] sm:$0xf]
    %v243 = vld [vmem:[#allocation2 + $0x25c] sm:$0xf]
    %v244 = vld [vmem:[#allocation2 + $0x260] sm:$0xf]
    %v245 = vld [vmem:[#allocation2 + $0x264] sm:$0xf]
    %v246 = vld [vmem:[#allocation2 + $0x268] sm:$0xf]
    %v247 = vld [vmem:[#allocation2 + $0x26c] sm:$0xf]
    %v248 = vld [vmem:[#allocation2 + $0x270] sm:$0xf]
    %v249 = vld [vmem:[#allocation2 + $0x274] sm:$0xf]
    %v250 = vld [vmem:[#allocation2 + $0x278] sm:$0xf]
    %v251 = vld [vmem:[#allocation2 + $0x27c] sm:$0xf]
    %v252 = vld [vmem:[#allocation2 + $0x280] sm:$0xf]
    %v253 = vld [vmem:[#allocation2 + $0x284] sm:$0xf]
    %v254 = vld [vmem:[#allocation2 + $0x288] sm:$0xf]
    %v255 = vld [vmem:[#allocation2 + $0x28c] sm:$0xf]
    %v256 = vld [vmem:[#allocation2 + $0x290] sm:$0xf]
    %v257 = vld [vmem:[#allocation2 + $0x294] sm:$0xf]
    %v258 = vld [vmem:[#allocation2 + $0x298] sm:$0xf]
    %v259 = vld [vmem:[#allocation2 + $0x29c] sm:$0xf]
    %v260 = vld [vmem:[#allocation2 + $0x2a0] sm:$0xf]
    %v261 = vld [vmem:[#allocation2 + $0x2a4] sm:$0xf]
    %v262 = vld [vmem:[#allocation2 + $0x2a8] sm:$0xf]
    %v263 = vld [vmem:[#allocation2 + $0x2ac] sm:$0xf]
    %v264 = vld [vmem:[#allocation2 + $0x2b0] sm:$0xf]
    %v265 = vld [vmem:[#allocation2 + $0x2b4] sm:$0xf]
    %v266 = vld [vmem:[#allocation2 + $0x2b8] sm:$0xf]
    %v267 = vld [vmem:[#allocation2 + $0x2bc] sm:$0xf]
    %v268 = vld [vmem:[#allocation2 + $0x2c0] sm:$0xf]
    %v269 = vld [vmem:[#allocation2 + $0x2c4] sm:$0xf]
    %v270 = vld [vmem:[#allocation2 + $0x2c8] sm:$0xf]
    %v271 = vld [vmem:[#allocation2 + $0x2cc] sm:$0xf]
    %v272 = vld [vmem:[#allocation2 + $0x2d0] sm:$0xf]
    %v273 = vld [vmem:[#allocation2 + $0x2d4] sm:$0xf]
    %v274 = vld [vmem:[#allocation2 + $0x2d8] sm:$0xf]
    %v275 = vld [vmem:[#allocation2 + $0x2dc] sm:$0xf]
    %v276 = vld [vmem:[#allocation2 + $0x2e0] sm:$0xf]
    %v277 = vld [vmem:[#allocation2 + $0x2e4] sm:$0xf]
    %v278 = vld [vmem:[#allocation2 + $0x2e8] sm:$0xf]
    %v279 = vld [vmem:[#allocation2 + $0x2ec] sm:$0xf]
    %v280 = vld [vmem:[#allocation2 + $0x2f0] sm:$0xf]
    %v281 = vld [vmem:[#allocation2 + $0x2f4] sm:$0xf]
    %v282 = vld [vmem:[#allocation2 + $0x2f8] sm:$0xf]
    %v283 = vld [vmem:[#allocation2 + $0x2fc] sm:$0xf]
    %v284 = vld [vmem:[#allocation2 + $0x300] sm:$0xf]
    %v285 = vld [vmem:[#allocation2 + $0x304] sm:$0xf]
    %v286 = vld [vmem:[#allocation2 + $0x308] sm:$0xf]
    %v287 = vld [vmem:[#allocation2 + $0x30c] sm:$0xf]
    %v288 = vld [vmem:[#allocation2 + $0x310] sm:$0xf]
    %v289 = vld [vmem:[#allocation2 + $0x314] sm:$0xf]
    %v290 = vld [vmem:[#allocation2 + $0x318] sm:$0xf]
    %v291 = vld [vmem:[#allocation2 + $0x31c] sm:$0xf]
    %v292 = vld [vmem:[#allocation2 + $0x320] sm:$0xf]
    %v293 = vld [vmem:[#allocation2 + $0x324] sm:$0xf]
    %v294 = vld [vmem:[#allocation2 + $0x328] sm:$0xf]
    %v295 = vld [vmem:[#allocation2 + $0x32c] sm:$0xf]
    %v296 = vld [vmem:[#allocation2 + $0x330] sm:$0xf]
    %v297 = vld [vmem:[#allocation2 + $0x334] sm:$0xf]
    %v298 = vld [vmem:[#allocation2 + $0x338] sm:$0xf]
    %v299 = vld [vmem:[#allocation2 + $0x33c] sm:$0xf]
    %v300 = vld [vmem:[#allocation2 + $0x340] sm:$0xf]
    %v301 = vld [vmem:[#allocation2 + $0x344] sm:$0xf]
    %v302 = vld [vmem:[#allocation2 + $0x348] sm:$0xf]
    %v303 = vld [vmem:[#allocation2 + $0x34c] sm:$0xf]
    %v304 = vld [vmem:[#allocation2 + $0x350] sm:$0xf]
    %v305 = vld [vmem:[#allocation2 + $0x354] sm:$0xf]
    %v306 = vld [vmem:[#allocation2 + $0x358] sm:$0xf]
    %v307 = vld [vmem:[#allocation2 + $0x35c] sm:$0xf]
    %v308 = vld [vmem:[#allocation2 + $0x360] sm:$0xf]
    %v309 = vld [vmem:[#allocation2 + $0x364] sm:$0xf]
    %v310 = vld [vmem:[#allocation2 + $0x368] sm:$0xf]
    %v311 = vld [vmem:[#allocation2 + $0x36c] sm:$0xf]
    %v312 = vld [vmem:[#allocation2 + $0x370] sm:$0xf]
    %v313 = vld [vmem:[#allocation2 + $0x374] sm:$0xf]
    %v314 = vld [vmem:[#allocation2 + $0x378] sm:$0xf]
    %v315 = vld [vmem:[#allocation2 + $0x37c] sm:$0xf]
    %v316 = vld [vmem:[#allocation2 + $0x380] sm:$0xf]
    %v317 = vld [vmem:[#allocation2 + $0x384] sm:$0xf]
    %v318 = vld [vmem:[#allocation2 + $0x388] sm:$0xf]
    %v319 = vld [vmem:[#allocation2 + $0x38c] sm:$0xf]
    %v320 = vld [vmem:[#allocation2 + $0x390] sm:$0xf]
    %v321 = vld [vmem:[#allocation2 + $0x394] sm:$0xf]
    %v322 = vld [vmem:[#allocation2 + $0x398] sm:$0xf]
    %v323 = vld [vmem:[#allocation2 + $0x39c] sm:$0xf]
    %v324 = vld [vmem:[#allocation2 + $0x3a0] sm:$0xf]
    %v325 = vld [vmem:[#allocation2 + $0x3a4] sm:$0xf]
    %v326 = vld [vmem:[#allocation2 + $0x3a8] sm:$0xf]
    %v327 = vld [vmem:[#allocation2 + $0x3ac] sm:$0xf]
    %v328 = vld [vmem:[#allocation2 + $0x3b0] sm:$0xf]
    %v329 = vld [vmem:[#allocation2 + $0x3b4] sm:$0xf]
    %v330 = vld [vmem:[#allocation2 + $0x3b8] sm:$0xf]
    %v331 = vld [vmem:[#allocation2 + $0x3bc] sm:$0xf]
    %v332 = vld [vmem:[#allocation2 + $0x3c0] sm:$0xf]
    %v333 = vld [vmem:[#allocation2 + $0x3c4] sm:$0xf]
    %v334 = vld [vmem:[#allocation2 + $0x3c8] sm:$0xf]
    %v335 = vld [vmem:[#allocation2 + $0x3cc] sm:$0xf]
    %v336 = vld [vmem:[#allocation2 + $0x3d0] sm:$0xf]
    %v337 = vld [vmem:[#allocation2 + $0x3d4] sm:$0xf]
    %v338 = vld [vmem:[#allocation2 + $0x3d8] sm:$0xf]
    %v339 = vld [vmem:[#allocation2 + $0x3dc] sm:$0xf]
    %v340 = vld [vmem:[#allocation2 + $0x3e0] sm:$0xf]
    %v341 = vld [vmem:[#allocation2 + $0x3e4] sm:$0xf]
    %v342 = vld [vmem:[#allocation2 + $0x3e8] sm:$0xf]
    %v343 = vld [vmem:[#allocation2 + $0x3ec] sm:$0xf]
    %v344 = vld [vmem:[#allocation2 + $0x3f0] sm:$0xf]
    %v345 = vld [vmem:[#allocation2 + $0x3f4] sm:$0xf]
    %v346 = vld [vmem:[#allocation2 + $0x3f8] sm:$0xf]
    %v347 = vld [vmem:[#allocation2 + $0x3fc] sm:$0xf]
    %v348 = vld [vmem:[#allocation2 + $0x400] sm:$0xf]
    %v349 = vld [vmem:[#allocation2 + $0x404] sm:$0xf]
    %v350 = vld [vmem:[#allocation2 + $0x408] sm:$0xf]
    %v351 = vld [vmem:[#allocation2 + $0x40c] sm:$0xf]
    %v352 = vld [vmem:[#allocation2 + $0x410] sm:$0xf]
    %v353 = vld [vmem:[#allocation2 + $0x414] sm:$0xf]
    %v354 = vld [vmem:[#allocation2 + $0x418] sm:$0xf]
    %v355 = vld [vmem:[#allocation2 + $0x41c] sm:$0xf]
    %v356 = vld [vmem:[#allocation2 + $0x420] sm:$0xf]
    %v357 = vld [vmem:[#allocation2 + $0x424] sm:$0xf]
    %v358 = vld [vmem:[#allocation2 + $0x428] sm:$0xf]
    %v359 = vld [vmem:[#allocation2 + $0x42c] sm:$0xf]
    %v360 = vld [vmem:[#allocation2 + $0x430] sm:$0xf]
    %v361 = vld [vmem:[#allocation2 + $0x434] sm:$0xf]
    %v362 = vld [vmem:[#allocation2 + $0x438] sm:$0xf]
    %v363 = vld [vmem:[#allocation2 + $0x43c] sm:$0xf]
    %v364 = vld [vmem:[#allocation2 + $0x440] sm:$0xf]
    %v365 = vld [vmem:[#allocation2 + $0x444] sm:$0xf]
    %v366 = vld [vmem:[#allocation2 + $0x448] sm:$0xf]
    %v367 = vld [vmem:[#allocation2 + $0x44c] sm:$0xf]
    %v368 = vld [vmem:[#allocation2 + $0x450] sm:$0xf]
    %v369 = vld [vmem:[#allocation2 + $0x454] sm:$0xf]
    %v370 = vld [vmem:[#allocation2 + $0x458] sm:$0xf]
    %v371 = vld [vmem:[#allocation2 + $0x45c] sm:$0xf]
    %v372 = vld [vmem:[#allocation2 + $0x460] sm:$0xf]
    %v373 = vld [vmem:[#allocation2 + $0x464] sm:$0xf]
    %v374 = vld [vmem:[#allocation2 + $0x468] sm:$0xf]
    %v375 = vld [vmem:[#allocation2 + $0x46c] sm:$0xf]
    %v376 = vld [vmem:[#allocation2 + $0x470] sm:$0xf]
    %v377 = vld [vmem:[#allocation2 + $0x474] sm:$0xf]
    %v378 = vld [vmem:[#allocation2 + $0x478] sm:$0xf]
    %v379 = vld [vmem:[#allocation2 + $0x47c] sm:$0xf]
    %v380 = vld [vmem:[#allocation2 + $0x480] sm:$0xf]
    %v381 = vld [vmem:[#allocation2 + $0x484] sm:$0xf]
    %v382 = vld [vmem:[#allocation2 + $0x488] sm:$0xf]
    %v383 = vld [vmem:[#allocation2 + $0x48c] sm:$0xf]
    %v384 = vld [vmem:[#allocation2 + $0x490] sm:$0xf]
    %v385 = vld [vmem:[#allocation2 + $0x494] sm:$0xf]
    %v386 = vld [vmem:[#allocation2 + $0x498] sm:$0xf]
    %v387 = vld [vmem:[#allocation2 + $0x49c] sm:$0xf]
    %v388 = vld [vmem:[#allocation2 + $0x4a0] sm:$0xf]
    %v389 = vld [vmem:[#allocation2 + $0x4a4] sm:$0xf]
    %v390 = vld [vmem:[#allocation2 + $0x4a8] sm:$0xf]
    %v391 = vld [vmem:[#allocation2 + $0x4ac] sm:$0xf]
    %v392 = vld [vmem:[#allocation2 + $0x4b0] sm:$0xf]
    %v393 = vld [vmem:[#allocation2 + $0x4b4] sm:$0xf]
    %v394 = vld [vmem:[#allocation2 + $0x4b8] sm:$0xf]
    %v395 = vld [vmem:[#allocation2 + $0x4bc] sm:$0xf]
    %v396 = vld [vmem:[#allocation2 + $0x4c0] sm:$0xf]
    %v397 = vld [vmem:[#allocation2 + $0x4c4] sm:$0xf]
    %v398 = vld [vmem:[#allocation2 + $0x4c8] sm:$0xf]
    %v399 = vld [vmem:[#allocation2 + $0x4cc] sm:$0xf]
    %v400 = vld [vmem:[#allocation2 + $0x4d0] sm:$0xf]
    %v401 = vld [vmem:[#allocation2 + $0x4d4] sm:$0xf]
    %v402 = vld [vmem:[#allocation2 + $0x4d8] sm:$0xf]
    %v403 = vld [vmem:[#allocation2 + $0x4dc] sm:$0xf]
    %v404 = vld [vmem:[#allocation2 + $0x4e0] sm:$0xf]
    %v405 = vld [vmem:[#allocation2 + $0x4e4] sm:$0xf]
    %v406 = vld [vmem:[#allocation2 + $0x4e8] sm:$0xf]
    %v407 = vld [vmem:[#allocation2 + $0x4ec] sm:$0xf]
    %v408 = vld [vmem:[#allocation2 + $0x4f0] sm:$0xf]
    %v409 = vld [vmem:[#allocation2 + $0x4f4] sm:$0xf]
    %v410 = vld [vmem:[#allocation2 + $0x4f8] sm:$0xf]
    %v411 = vld [vmem:[#allocation2 + $0x4fc] sm:$0xf]
    %v412 = vld [vmem:[#allocation2 + $0x500] sm:$0xf]
    %v413 = vld [vmem:[#allocation2 + $0x504] sm:$0xf]
    %v414 = vld [vmem:[#allocation2 + $0x508] sm:$0xf]
    %v415 = vld [vmem:[#allocation2 + $0x50c] sm:$0xf]
    %v416 = vld [vmem:[#allocation2 + $0x510] sm:$0xf]
    %v417 = vld [vmem:[#allocation2 + $0x514] sm:$0xf]
    %v418 = vld [vmem:[#allocation2 + $0x518] sm:$0xf]
    %v419 = vld [vmem:[#allocation2 + $0x51c] sm:$0xf]
    %v420 = vld [vmem:[#allocation2 + $0x520] sm:$0xf]
    %v421 = vld [vmem:[#allocation2 + $0x524] sm:$0xf]
    %v422 = vld [vmem:[#allocation2 + $0x528] sm:$0xf]
    %v423 = vld [vmem:[#allocation2 + $0x52c] sm:$0xf]
    %v424 = vld [vmem:[#allocation2 + $0x530] sm:$0xf]
    %v425 = vld [vmem:[#allocation2 + $0x534] sm:$0xf]
    %v426 = vld [vmem:[#allocation2 + $0x538] sm:$0xf]
    %v427 = vld [vmem:[#allocation2 + $0x53c] sm:$0xf]
    %v428 = vld [vmem:[#allocation2 + $0x540] sm:$0xf]
    %v429 = vld [vmem:[#allocation2 + $0x544] sm:$0xf]
    %v430 = vld [vmem:[#allocation2 + $0x548] sm:$0xf]
    %v431 = vld [vmem:[#allocation2 + $0x54c] sm:$0xf]
    %v432 = vld [vmem:[#allocation2 + $0x550] sm:$0xf]
    %v433 = vld [vmem:[#allocation2 + $0x554] sm:$0xf]
    %v434 = vld [vmem:[#allocation2 + $0x558] sm:$0xf]
    %v435 = vld [vmem:[#allocation2 + $0x55c] sm:$0xf]
    %v436 = vld [vmem:[#allocation2 + $0x560] sm:$0xf]
    %v437 = vld [vmem:[#allocation2 + $0x564] sm:$0xf]
    %v438 = vld [vmem:[#allocation2 + $0x568] sm:$0xf]
    %v439 = vld [vmem:[#allocation2 + $0x56c] sm:$0xf]
    %v440 = vld [vmem:[#allocation2 + $0x570] sm:$0xf]
    %v441 = vld [vmem:[#allocation2 + $0x574] sm:$0xf]
    %v442 = vld [vmem:[#allocation2 + $0x578] sm:$0xf]
    %v443 = vld [vmem:[#allocation2 + $0x57c] sm:$0xf]
    %v444 = vld [vmem:[#allocation2 + $0x580] sm:$0xf]
    %v445 = vld [vmem:[#allocation2 + $0x584] sm:$0xf]
    %v446 = vld [vmem:[#allocation2 + $0x588] sm:$0xf]
    %v447 = vld [vmem:[#allocation2 + $0x58c] sm:$0xf]
    %v448 = vld [vmem:[#allocation2 + $0x590] sm:$0xf]
    %v449 = vld [vmem:[#allocation2 + $0x594] sm:$0xf]
    %v450 = vld [vmem:[#allocation2 + $0x598] sm:$0xf]
    %v451 = vld [vmem:[#allocation2 + $0x59c] sm:$0xf]
    %v452 = vld [vmem:[#allocation2 + $0x5a0] sm:$0xf]
    %v453 = vld [vmem:[#allocation2 + $0x5a4] sm:$0xf]
    %v454 = vld [vmem:[#allocation2 + $0x5a8] sm:$0xf]
    %v455 = vld [vmem:[#allocation2 + $0x5ac] sm:$0xf]
    %v456 = vld [vmem:[#allocation2 + $0x5b0] sm:$0xf]
    %v457 = vld [vmem:[#allocation2 + $0x5b4] sm:$0xf]
    %v458 = vld [vmem:[#allocation2 + $0x5b8] sm:$0xf]
    %v459 = vld [vmem:[#allocation2 + $0x5bc] sm:$0xf]
    %v460 = vld [vmem:[#allocation2 + $0x5c0] sm:$0xf]
    %v461 = vld [vmem:[#allocation2 + $0x5c4] sm:$0xf]
    %v462 = vld [vmem:[#allocation2 + $0x5c8] sm:$0xf]
    %v463 = vld [vmem:[#allocation2 + $0x5cc] sm:$0xf]
    %v464 = vld [vmem:[#allocation2 + $0x5d0] sm:$0xf]
    %v465 = vld [vmem:[#allocation2 + $0x5d4] sm:$0xf]
    %v466 = vld [vmem:[#allocation2 + $0x5d8] sm:$0xf]
    %v467 = vld [vmem:[#allocation2 + $0x5dc] sm:$0xf]
    %v468 = vld [vmem:[#allocation2 + $0x5e0] sm:$0xf]
    %v469 = vld [vmem:[#allocation2 + $0x5e4] sm:$0xf]
    %v470 = vld [vmem:[#allocation2 + $0x5e8] sm:$0xf]
    %v471 = vld [vmem:[#allocation2 + $0x5ec] sm:$0xf]
    %v472 = vld [vmem:[#allocation2 + $0x5f0] sm:$0xf]
    %v473 = vld [vmem:[#allocation2 + $0x5f4] sm:$0xf]
    %v474 = vld [vmem:[#allocation2 + $0x5f8] sm:$0xf]
    %v475 = vld [vmem:[#allocation2 + $0x5fc] sm:$0xf]
    %v476 = vld [vmem:[#allocation2 + $0x600] sm:$0xf]
    %v477 = vld [vmem:[#allocation2 + $0x604] sm:$0xf]
    %v478 = vld [vmem:[#allocation2 + $0x608] sm:$0xf]
    %v479 = vld [vmem:[#allocation2 + $0x60c] sm:$0xf]
    %v480 = vld [vmem:[#allocation2 + $0x610] sm:$0xf]
    %v481 = vld [vmem:[#allocation2 + $0x614] sm:$0xf]
    %v482 = vld [vmem:[#allocation2 + $0x618] sm:$0xf]
    %v483 = vld [vmem:[#allocation2 + $0x61c] sm:$0xf]
    %v484 = vld [vmem:[%s1] sm:$0xf]
    %v485 = vld [vmem:[#allocation5] sm:$0xf]
    %v486 = vld [vmem:[#allocation5 + $0x4] sm:$0x1]
    %v489 = vunpack.c.l.b16 %v485
    %v490 = vunpack.c.l.b16 %v486
    %v491 = vpack.c.b16 %v490, %v489
    %vm492 = vcmask 80896
    %v494 = vsel %vm492, %v484, 0
    %vm496 = vcmask 1044480
    %v498 = vsel %vm496, %v491, 0
    %500 = vmatpush.bf16.msra.mxu0 0
    %501 = vmatpush.bf16.msra.mxu0 0
    %502 = vmatpush.bf16.msra.mxu0 0
    %503 = vmatpush.bf16.msra.mxu0 0
    %504 = vmatpush.bf16.msra.mxu0 0
    %505 = vmatpush.bf16.msra.mxu0 0
    %506 = vmatpush.bf16.msra.mxu0 0
    %507 = vmatpush.bf16.msra.mxu0 %v498
    %508 = vmatmul.bf16.gmra.mxu0 %v494
    %v509 = vpop.f32.mrf.mxu0
    %v510 = vadd.f32 0.0, %v509
    %v511 = vpop.f32.mrf.mxu0
    %512 = vdwg.mxu0
    %v526 = vunpack.c.l.b16 %v79
    %v527 = vunpack.c.h.b16 %v79
    %v528 = vunpack.c.l.b16 %v80
    %v529 = vunpack.c.h.b16 %v80
    %v530 = vunpack.c.l.b16 %v81
    %v531 = vunpack.c.h.b16 %v81
    %v532 = vunpack.c.l.b16 %v82
    %v533 = vunpack.c.h.b16 %v82
    %v534 = vunpack.c.l.b16 %v83
    %v535 = vunpack.c.h.b16 %v83
    %v536 = vunpack.c.l.b16 %v84
    %v537 = vunpack.c.h.b16 %v84
    %v538 = vunpack.c.l.b16 %v85
    %v539 = vunpack.c.h.b16 %v85
    %v540 = vunpack.c.l.b16 %v86
    %v541 = vunpack.c.h.b16 %v86
    %v542 = vunpack.c.l.b16 %v87
    %v543 = vunpack.c.h.b16 %v87
    %v544 = vunpack.c.l.b16 %v88
    %v545 = vunpack.c.h.b16 %v88
    %v546 = vunpack.c.l.b16 %v89
    %v547 = vunpack.c.h.b16 %v89
    %v548 = vunpack.c.l.b16 %v90
    %v549 = vunpack.c.h.b16 %v90
    %v550 = vunpack.c.l.b16 %v91
    %v551 = vpack.c.b16 %v526, %v526
    %v552 = vpack.c.b16 %v527, %v527
    %v553 = vpack.c.b16 %v528, %v528
    %v554 = vpack.c.b16 %v529, %v529
    %v555 = vpack.c.b16 %v530, %v530
    %v556 = vpack.c.b16 %v531, %v531
    %v557 = vpack.c.b16 %v532, %v532
    %v558 = vpack.c.b16 %v533, %v533
    %v559 = vpack.c.b16 %v534, %v534
    %v560 = vpack.c.b16 %v535, %v535
    %v561 = vpack.c.b16 %v536, %v536
    %v562 = vpack.c.b16 %v537, %v537
    %v563 = vpack.c.b16 %v538, %v538
    %v564 = vpack.c.b16 %v539, %v539
    %v565 = vpack.c.b16 %v540, %v540
    %v566 = vpack.c.b16 %v541, %v541
    %v567 = vpack.c.b16 %v542, %v542
    %v568 = vpack.c.b16 %v543, %v543
    %v569 = vpack.c.b16 %v544, %v544
    %v570 = vpack.c.b16 %v545, %v545
    %v571 = vpack.c.b16 %v546, %v546
    %v572 = vpack.c.b16 %v547, %v547
    %v573 = vpack.c.b16 %v548, %v548
    %v574 = vpack.c.b16 %v549, %v549
    %v575 = vpack.c.b16 %v550, %v550
    %v992 = vunpack.c.l.b16 %v92
    %v993 = vunpack.c.l.b16 %v93
    %v994 = vunpack.c.l.b16 %v94
    %v995 = vunpack.c.l.b16 %v95
    %v996 = vunpack.c.l.b16 %v96
    %v997 = vunpack.c.l.b16 %v97
    %v998 = vunpack.c.l.b16 %v98
    %v999 = vunpack.c.l.b16 %v99
    %v1000 = vunpack.c.l.b16 %v100
    %v1001 = vunpack.c.l.b16 %v101
    %v1002 = vunpack.c.l.b16 %v102
    %v1003 = vunpack.c.l.b16 %v103
    %v1004 = vunpack.c.l.b16 %v104
    %v1005 = vunpack.c.l.b16 %v105
    %v1006 = vunpack.c.l.b16 %v106
    %v1007 = vunpack.c.l.b16 %v107
    %v1008 = vunpack.c.l.b16 %v108
    %v1009 = vunpack.c.l.b16 %v109
    %v1010 = vunpack.c.l.b16 %v110
    %v1011 = vunpack.c.l.b16 %v111
    %v1012 = vunpack.c.l.b16 %v112
    %v1013 = vunpack.c.l.b16 %v113
    %v1014 = vunpack.c.l.b16 %v114
    %v1015 = vunpack.c.l.b16 %v115
    %v1016 = vunpack.c.l.b16 %v116
    %v1017 = vunpack.c.l.b16 %v117
    %v1018 = vunpack.c.l.b16 %v118
    %v1019 = vunpack.c.l.b16 %v119
    %v1020 = vunpack.c.l.b16 %v120
    %v1021 = vunpack.c.l.b16 %v121
    %v1022 = vunpack.c.l.b16 %v122
    %v1023 = vunpack.c.l.b16 %v123
    %v1024 = vunpack.c.l.b16 %v124
    %v1025 = vunpack.c.l.b16 %v125
    %v1026 = vunpack.c.l.b16 %v126
    %v1027 = vunpack.c.l.b16 %v127
    %v1028 = vunpack.c.l.b16 %v128
    %v1029 = vunpack.c.l.b16 %v129
    %v1030 = vunpack.c.l.b16 %v130
    %v1031 = vunpack.c.l.b16 %v131
    %v1032 = vunpack.c.l.b16 %v132
    %v1033 = vunpack.c.l.b16 %v133
    %v1034 = vunpack.c.l.b16 %v134
    %v1035 = vunpack.c.l.b16 %v135
    %v1036 = vunpack.c.l.b16 %v136
    %v1037 = vunpack.c.l.b16 %v137
    %v1038 = vunpack.c.l.b16 %v138
    %v1039 = vunpack.c.l.b16 %v139
    %v1040 = vunpack.c.l.b16 %v140
    %v1041 = vunpack.c.l.b16 %v141
    %v1042 = vunpack.c.l.b16 %v142
    %v1043 = vunpack.c.l.b16 %v143
    %v1044 = vunpack.c.l.b16 %v144
    %v1045 = vunpack.c.l.b16 %v145
    %v1046 = vunpack.c.l.b16 %v146
    %v1047 = vunpack.c.l.b16 %v147
    %v1048 = vunpack.c.l.b16 %v148
    %v1049 = vunpack.c.l.b16 %v149
    %v1050 = vunpack.c.l.b16 %v150
    %v1051 = vunpack.c.l.b16 %v151
    %v1052 = vunpack.c.l.b16 %v152
    %v1053 = vunpack.c.l.b16 %v153
    %v1054 = vunpack.c.l.b16 %v154
    %v1055 = vunpack.c.l.b16 %v155
    %v1056 = vunpack.c.l.b16 %v156
    %v1057 = vunpack.c.l.b16 %v157
    %v1058 = vunpack.c.l.b16 %v158
    %v1059 = vunpack.c.l.b16 %v159
    %v1060 = vunpack.c.l.b16 %v160
    %v1061 = vunpack.c.l.b16 %v161
    %v1062 = vunpack.c.l.b16 %v162
    %v1063 = vunpack.c.l.b16 %v163
    %v1064 = vunpack.c.l.b16 %v164
    %v1065 = vunpack.c.l.b16 %v165
    %v1066 = vunpack.c.l.b16 %v166
    %v1067 = vunpack.c.l.b16 %v167
    %v1068 = vunpack.c.l.b16 %v168
    %v1069 = vunpack.c.l.b16 %v169
    %v1070 = vunpack.c.l.b16 %v170
    %v1071 = vunpack.c.l.b16 %v171
    %v1072 = vunpack.c.l.b16 %v172
    %v1073 = vunpack.c.l.b16 %v173
    %v1074 = vunpack.c.l.b16 %v174
    %v1075 = vunpack.c.l.b16 %v175
    %v1076 = vunpack.c.l.b16 %v176
    %v1077 = vunpack.c.l.b16 %v177
    %v1078 = vunpack.c.l.b16 %v178
    %v1079 = vunpack.c.l.b16 %v179
    %v1080 = vunpack.c.l.b16 %v180
    %v1081 = vunpack.c.l.b16 %v181
    %v1082 = vunpack.c.l.b16 %v182
    %v1083 = vunpack.c.l.b16 %v183
    %v1084 = vunpack.c.l.b16 %v184
    %v1085 = vunpack.c.l.b16 %v185
    %v1086 = vunpack.c.l.b16 %v186
    %v1087 = vunpack.c.l.b16 %v187
    %v1088 = vunpack.c.l.b16 %v188
    %v1089 = vunpack.c.l.b16 %v189
    %v1090 = vunpack.c.l.b16 %v190
    %v1091 = vunpack.c.l.b16 %v191
    %v1092 = vunpack.c.l.b16 %v192
    %v1093 = vunpack.c.l.b16 %v193
    %v1094 = vunpack.c.l.b16 %v194
    %v1095 = vunpack.c.l.b16 %v195
    %v1096 = vunpack.c.l.b16 %v196
    %v1097 = vunpack.c.l.b16 %v197
    %v1098 = vunpack.c.l.b16 %v198
    %v1099 = vunpack.c.l.b16 %v199
    %v1100 = vunpack.c.l.b16 %v200
    %v1101 = vunpack.c.l.b16 %v201
    %v1102 = vunpack.c.l.b16 %v202
    %v1103 = vunpack.c.l.b16 %v203
    %v1104 = vunpack.c.l.b16 %v204
    %v1105 = vunpack.c.l.b16 %v205
    %v1106 = vunpack.c.l.b16 %v206
    %v1107 = vunpack.c.l.b16 %v207
    %v1108 = vunpack.c.l.b16 %v208
    %v1109 = vunpack.c.l.b16 %v209
    %v1110 = vunpack.c.l.b16 %v210
    %v1111 = vunpack.c.l.b16 %v211
    %v1112 = vunpack.c.l.b16 %v212
    %v1113 = vunpack.c.l.b16 %v213
    %v1114 = vunpack.c.l.b16 %v214
    %v1115 = vunpack.c.l.b16 %v215
    %v1116 = vunpack.c.l.b16 %v216
    %v1117 = vunpack.c.l.b16 %v217
    %v1118 = vunpack.c.l.b16 %v218
    %v1119 = vunpack.c.l.b16 %v219
    %v1120 = vunpack.c.l.b16 %v220
    %v1121 = vunpack.c.l.b16 %v221
    %v1122 = vunpack.c.l.b16 %v222
    %v1123 = vunpack.c.l.b16 %v223
    %v1124 = vunpack.c.l.b16 %v224
    %v1125 = vunpack.c.l.b16 %v225
    %v1126 = vunpack.c.l.b16 %v226
    %v1127 = vunpack.c.l.b16 %v227
    %v1128 = vunpack.c.l.b16 %v228
    %v1129 = vunpack.c.l.b16 %v229
    %v1130 = vunpack.c.l.b16 %v230
    %v1131 = vunpack.c.l.b16 %v231
    %v1132 = vunpack.c.l.b16 %v232
    %v1133 = vunpack.c.l.b16 %v233
    %v1134 = vunpack.c.l.b16 %v234
    %v1135 = vunpack.c.l.b16 %v235
    %v1136 = vunpack.c.l.b16 %v236
    %v1137 = vunpack.c.l.b16 %v237
    %v1138 = vunpack.c.l.b16 %v238
    %v1139 = vunpack.c.l.b16 %v239
    %v1140 = vunpack.c.l.b16 %v240
    %v1141 = vunpack.c.l.b16 %v241
    %v1142 = vunpack.c.l.b16 %v242
    %v1143 = vunpack.c.l.b16 %v243
    %v1144 = vunpack.c.l.b16 %v244
    %v1145 = vunpack.c.l.b16 %v245
    %v1146 = vunpack.c.l.b16 %v246
    %v1147 = vunpack.c.l.b16 %v247
    %v1148 = vunpack.c.l.b16 %v248
    %v1149 = vunpack.c.l.b16 %v249
    %v1150 = vunpack.c.l.b16 %v250
    %v1151 = vunpack.c.l.b16 %v251
    %v1152 = vunpack.c.l.b16 %v252
    %v1153 = vunpack.c.l.b16 %v253
    %v1154 = vunpack.c.l.b16 %v254
    %v1155 = vunpack.c.l.b16 %v255
    %v1156 = vunpack.c.l.b16 %v256
    %v1157 = vunpack.c.l.b16 %v257
    %v1158 = vunpack.c.l.b16 %v258
    %v1159 = vunpack.c.l.b16 %v259
    %v1160 = vunpack.c.l.b16 %v260
    %v1161 = vunpack.c.l.b16 %v261
    %v1162 = vunpack.c.l.b16 %v262
    %v1163 = vunpack.c.l.b16 %v263
    %v1164 = vunpack.c.l.b16 %v264
    %v1165 = vunpack.c.l.b16 %v265
    %v1166 = vunpack.c.l.b16 %v266
    %v1167 = vunpack.c.l.b16 %v267
    %v1168 = vunpack.c.l.b16 %v268
    %v1169 = vunpack.c.l.b16 %v269
    %v1170 = vunpack.c.l.b16 %v270
    %v1171 = vunpack.c.l.b16 %v271
    %v1172 = vunpack.c.l.b16 %v272
    %v1173 = vunpack.c.l.b16 %v273
    %v1174 = vunpack.c.l.b16 %v274
    %v1175 = vunpack.c.l.b16 %v275
    %v1176 = vunpack.c.l.b16 %v276
    %v1177 = vunpack.c.l.b16 %v277
    %v1178 = vunpack.c.l.b16 %v278
    %v1179 = vunpack.c.l.b16 %v279
    %v1180 = vunpack.c.l.b16 %v280
    %v1181 = vunpack.c.l.b16 %v281
    %v1182 = vunpack.c.l.b16 %v282
    %v1183 = vunpack.c.l.b16 %v283
    %v1184 = vunpack.c.l.b16 %v284
    %v1185 = vunpack.c.l.b16 %v285
    %v1186 = vunpack.c.l.b16 %v286
    %v1187 = vunpack.c.l.b16 %v287
    %v1188 = vunpack.c.l.b16 %v288
    %v1189 = vunpack.c.l.b16 %v289
    %v1190 = vunpack.c.l.b16 %v290
    %v1191 = vunpack.c.l.b16 %v291
    %v1192 = vunpack.c.l.b16 %v292
    %v1193 = vunpack.c.l.b16 %v293
    %v1194 = vunpack.c.l.b16 %v294
    %v1195 = vunpack.c.l.b16 %v295
    %v1196 = vunpack.c.l.b16 %v296
    %v1197 = vunpack.c.l.b16 %v297
    %v1198 = vunpack.c.l.b16 %v298
    %v1199 = vunpack.c.l.b16 %v299
    %v1200 = vunpack.c.l.b16 %v300
    %v1201 = vunpack.c.l.b16 %v301
    %v1202 = vunpack.c.l.b16 %v302
    %v1203 = vunpack.c.l.b16 %v303
    %v1204 = vunpack.c.l.b16 %v304
    %v1205 = vunpack.c.l.b16 %v305
    %v1206 = vunpack.c.l.b16 %v306
    %v1207 = vunpack.c.l.b16 %v307
    %v1208 = vunpack.c.l.b16 %v308
    %v1209 = vunpack.c.l.b16 %v309
    %v1210 = vunpack.c.l.b16 %v310
    %v1211 = vunpack.c.l.b16 %v311
    %v1212 = vunpack.c.l.b16 %v312
    %v1213 = vunpack.c.l.b16 %v313
    %v1214 = vunpack.c.l.b16 %v314
    %v1215 = vunpack.c.l.b16 %v315
    %v1216 = vunpack.c.l.b16 %v316
    %v1217 = vunpack.c.l.b16 %v317
    %v1218 = vunpack.c.l.b16 %v318
    %v1219 = vunpack.c.l.b16 %v319
    %v1220 = vunpack.c.l.b16 %v320
    %v1221 = vunpack.c.l.b16 %v321
    %v1222 = vunpack.c.l.b16 %v322
    %v1223 = vunpack.c.l.b16 %v323
    %v1224 = vunpack.c.l.b16 %v324
    %v1225 = vunpack.c.l.b16 %v325
    %v1226 = vunpack.c.l.b16 %v326
    %v1227 = vunpack.c.l.b16 %v327
    %v1228 = vunpack.c.l.b16 %v328
    %v1229 = vunpack.c.l.b16 %v329
    %v1230 = vunpack.c.l.b16 %v330
    %v1231 = vunpack.c.l.b16 %v331
    %v1232 = vunpack.c.l.b16 %v332
    %v1233 = vunpack.c.l.b16 %v333
    %v1234 = vunpack.c.l.b16 %v334
    %v1235 = vunpack.c.l.b16 %v335
    %v1236 = vunpack.c.l.b16 %v336
    %v1237 = vunpack.c.l.b16 %v337
    %v1238 = vunpack.c.l.b16 %v338
    %v1239 = vunpack.c.l.b16 %v339
    %v1240 = vunpack.c.l.b16 %v340
    %v1241 = vunpack.c.l.b16 %v341
    %v1242 = vunpack.c.l.b16 %v342
    %v1243 = vunpack.c.l.b16 %v343
    %v1244 = vunpack.c.l.b16 %v344
    %v1245 = vunpack.c.l.b16 %v345
    %v1246 = vunpack.c.l.b16 %v346
    %v1247 = vunpack.c.l.b16 %v347
    %v1248 = vunpack.c.l.b16 %v348
    %v1249 = vunpack.c.l.b16 %v349
    %v1250 = vunpack.c.l.b16 %v350
    %v1251 = vunpack.c.l.b16 %v351
    %v1252 = vunpack.c.l.b16 %v352
    %v1253 = vunpack.c.l.b16 %v353
    %v1254 = vunpack.c.l.b16 %v354
    %v1255 = vunpack.c.l.b16 %v355
    %v1256 = vunpack.c.l.b16 %v356
    %v1257 = vunpack.c.l.b16 %v357
    %v1258 = vunpack.c.l.b16 %v358
    %v1259 = vunpack.c.l.b16 %v359
    %v1260 = vunpack.c.l.b16 %v360
    %v1261 = vunpack.c.l.b16 %v361
    %v1262 = vunpack.c.l.b16 %v362
    %v1263 = vunpack.c.l.b16 %v363
    %v1264 = vunpack.c.l.b16 %v364
    %v1265 = vunpack.c.l.b16 %v365
    %v1266 = vunpack.c.l.b16 %v366
    %v1267 = vunpack.c.l.b16 %v367
    %v1268 = vunpack.c.l.b16 %v368
    %v1269 = vunpack.c.l.b16 %v369
    %v1270 = vunpack.c.l.b16 %v370
    %v1271 = vunpack.c.l.b16 %v371
    %v1272 = vunpack.c.l.b16 %v372
    %v1273 = vunpack.c.l.b16 %v373
    %v1274 = vunpack.c.l.b16 %v374
    %v1275 = vunpack.c.l.b16 %v375
    %v1276 = vunpack.c.l.b16 %v376
    %v1277 = vunpack.c.l.b16 %v377
    %v1278 = vunpack.c.l.b16 %v378
    %v1279 = vunpack.c.l.b16 %v379
    %v1280 = vunpack.c.l.b16 %v380
    %v1281 = vunpack.c.l.b16 %v381
    %v1282 = vunpack.c.l.b16 %v382
    %v1283 = vunpack.c.l.b16 %v383
    %v1284 = vunpack.c.l.b16 %v384
    %v1285 = vunpack.c.l.b16 %v385
    %v1286 = vunpack.c.l.b16 %v386
    %v1287 = vunpack.c.l.b16 %v387
    %v1288 = vunpack.c.l.b16 %v388
    %v1289 = vunpack.c.l.b16 %v389
    %v1290 = vunpack.c.l.b16 %v390
    %v1291 = vunpack.c.l.b16 %v391
    %v1292 = vunpack.c.l.b16 %v392
    %v1293 = vunpack.c.l.b16 %v393
    %v1294 = vunpack.c.l.b16 %v394
    %v1295 = vunpack.c.l.b16 %v395
    %v1296 = vunpack.c.l.b16 %v396
    %v1297 = vunpack.c.l.b16 %v397
    %v1298 = vunpack.c.l.b16 %v398
    %v1299 = vunpack.c.l.b16 %v399
    %v1300 = vunpack.c.l.b16 %v400
    %v1301 = vunpack.c.l.b16 %v401
    %v1302 = vunpack.c.l.b16 %v402
    %v1303 = vunpack.c.l.b16 %v403
    %v1304 = vunpack.c.l.b16 %v404
    %v1305 = vunpack.c.l.b16 %v405
    %v1306 = vunpack.c.l.b16 %v406
    %v1307 = vunpack.c.l.b16 %v407
    %v1308 = vunpack.c.l.b16 %v408
    %v1309 = vunpack.c.l.b16 %v409
    %v1310 = vunpack.c.l.b16 %v410
    %v1311 = vunpack.c.l.b16 %v411
    %v1312 = vunpack.c.l.b16 %v412
    %v1313 = vunpack.c.l.b16 %v413
    %v1314 = vunpack.c.l.b16 %v414
    %v1315 = vunpack.c.l.b16 %v415
    %v1316 = vunpack.c.l.b16 %v416
    %v1317 = vunpack.c.l.b16 %v417
    %v1318 = vunpack.c.l.b16 %v418
    %v1319 = vunpack.c.l.b16 %v419
    %v1320 = vunpack.c.l.b16 %v420
    %v1321 = vunpack.c.l.b16 %v421
    %v1322 = vunpack.c.l.b16 %v422
    %v1323 = vunpack.c.l.b16 %v423
    %v1324 = vunpack.c.l.b16 %v424
    %v1325 = vunpack.c.l.b16 %v425
    %v1326 = vunpack.c.l.b16 %v426
    %v1327 = vunpack.c.l.b16 %v427
    %v1328 = vunpack.c.l.b16 %v428
    %v1329 = vunpack.c.l.b16 %v429
    %v1330 = vunpack.c.l.b16 %v430
    %v1331 = vunpack.c.l.b16 %v431
    %v1332 = vunpack.c.l.b16 %v432
    %v1333 = vunpack.c.l.b16 %v433
    %v1334 = vunpack.c.l.b16 %v434
    %v1335 = vunpack.c.l.b16 %v435
    %v1336 = vunpack.c.l.b16 %v436
    %v1337 = vunpack.c.l.b16 %v437
    %v1338 = vunpack.c.l.b16 %v438
    %v1339 = vunpack.c.l.b16 %v439
    %v1340 = vunpack.c.l.b16 %v440
    %v1341 = vunpack.c.l.b16 %v441
    %v1342 = vunpack.c.l.b16 %v442
    %v1343 = vunpack.c.l.b16 %v443
    %v1344 = vunpack.c.l.b16 %v444
    %v1345 = vunpack.c.l.b16 %v445
    %v1346 = vunpack.c.l.b16 %v446
    %v1347 = vunpack.c.l.b16 %v447
    %v1348 = vunpack.c.l.b16 %v448
    %v1349 = vunpack.c.l.b16 %v449
    %v1350 = vunpack.c.l.b16 %v450
    %v1351 = vunpack.c.l.b16 %v451
    %v1352 = vunpack.c.l.b16 %v452
    %v1353 = vunpack.c.l.b16 %v453
    %v1354 = vunpack.c.l.b16 %v454
    %v1355 = vunpack.c.l.b16 %v455
    %v1356 = vunpack.c.l.b16 %v456
    %v1357 = vunpack.c.l.b16 %v457
    %v1358 = vunpack.c.l.b16 %v458
    %v1359 = vunpack.c.l.b16 %v459
    %v1360 = vunpack.c.l.b16 %v460
    %v1361 = vunpack.c.l.b16 %v461
    %v1362 = vunpack.c.l.b16 %v462
    %v1363 = vunpack.c.l.b16 %v463
    %v1364 = vunpack.c.l.b16 %v464
    %v1365 = vunpack.c.l.b16 %v465
    %v1366 = vunpack.c.l.b16 %v466
    %v1367 = vunpack.c.l.b16 %v467
    %v1368 = vunpack.c.l.b16 %v468
    %v1369 = vunpack.c.l.b16 %v469
    %v1370 = vunpack.c.l.b16 %v470
    %v1371 = vunpack.c.l.b16 %v471
    %v1372 = vunpack.c.l.b16 %v472
    %v1373 = vunpack.c.l.b16 %v473
    %v1374 = vunpack.c.l.b16 %v474
    %v1375 = vunpack.c.l.b16 %v475
    %v1376 = vunpack.c.l.b16 %v476
    %v1377 = vunpack.c.l.b16 %v477
    %v1378 = vunpack.c.l.b16 %v478
    %v1379 = vunpack.c.l.b16 %v479
    %v1380 = vunpack.c.l.b16 %v480
    %v1381 = vunpack.c.l.b16 %v481
    %v1382 = vunpack.c.l.b16 %v482
    %v1383 = vunpack.c.l.b16 %v483
    %v1384 = vpack.c.b16 %v993, %v992
    %v1385 = vpack.c.b16 %v995, %v994
    %v1386 = vpack.c.b16 %v997, %v996
    %v1387 = vpack.c.b16 %v999, %v998
    %v1388 = vpack.c.b16 %v1001, %v1000
    %v1389 = vpack.c.b16 %v1003, %v1002
    %v1390 = vpack.c.b16 %v1005, %v1004
    %v1391 = vpack.c.b16 %v1007, %v1006
    %v1392 = vpack.c.b16 %v1009, %v1008
    %v1393 = vpack.c.b16 %v1011, %v1010
    %v1394 = vpack.c.b16 %v1013, %v1012
    %v1395 = vpack.c.b16 %v1015, %v1014
    %v1396 = vpack.c.b16 %v1017, %v1016
    %v1397 = vpack.c.b16 %v1019, %v1018
    %v1398 = vpack.c.b16 %v1021, %v1020
    %v1399 = vpack.c.b16 %v1023, %v1022
    %v1400 = vpack.c.b16 %v1025, %v1024
    %v1401 = vpack.c.b16 %v1027, %v1026
    %v1402 = vpack.c.b16 %v1029, %v1028
    %v1403 = vpack.c.b16 %v1031, %v1030
    %v1404 = vpack.c.b16 %v1033, %v1032
    %v1405 = vpack.c.b16 %v1035, %v1034
    %v1406 = vpack.c.b16 %v1037, %v1036
    %v1407 = vpack.c.b16 %v1039, %v1038
    %v1408 = vpack.c.b16 %v1041, %v1040
    %v1409 = vpack.c.b16 %v1043, %v1042
    %v1410 = vpack.c.b16 %v1045, %v1044
    %v1411 = vpack.c.b16 %v1047, %v1046
    %v1412 = vpack.c.b16 %v1049, %v1048
    %v1413 = vpack.c.b16 %v1051, %v1050
    %v1414 = vpack.c.b16 %v1053, %v1052
    %v1415 = vpack.c.b16 %v1055, %v1054
    %v1416 = vpack.c.b16 %v1057, %v1056
    %v1417 = vpack.c.b16 %v1059, %v1058
    %v1418 = vpack.c.b16 %v1061, %v1060
    %v1419 = vpack.c.b16 %v1063, %v1062
    %v1420 = vpack.c.b16 %v1065, %v1064
    %v1421 = vpack.c.b16 %v1067, %v1066
    %v1422 = vpack.c.b16 %v1069, %v1068
    %v1423 = vpack.c.b16 %v1071, %v1070
    %v1424 = vpack.c.b16 %v1073, %v1072
    %v1425 = vpack.c.b16 %v1075, %v1074
    %v1426 = vpack.c.b16 %v1077, %v1076
    %v1427 = vpack.c.b16 %v1079, %v1078
    %v1428 = vpack.c.b16 %v1081, %v1080
    %v1429 = vpack.c.b16 %v1083, %v1082
    %v1430 = vpack.c.b16 %v1085, %v1084
    %v1431 = vpack.c.b16 %v1087, %v1086
    %v1432 = vpack.c.b16 %v1089, %v1088
    %v1433 = vpack.c.b16 %v1091, %v1090
    %v1434 = vpack.c.b16 %v1093, %v1092
    %v1435 = vpack.c.b16 %v1095, %v1094
    %v1436 = vpack.c.b16 %v1097, %v1096
    %v1437 = vpack.c.b16 %v1099, %v1098
    %v1438 = vpack.c.b16 %v1101, %v1100
    %v1439 = vpack.c.b16 %v1103, %v1102
    %v1440 = vpack.c.b16 %v1105, %v1104
    %v1441 = vpack.c.b16 %v1107, %v1106
    %v1442 = vpack.c.b16 %v1109, %v1108
    %v1443 = vpack.c.b16 %v1111, %v1110
    %v1444 = vpack.c.b16 %v1113, %v1112
    %v1445 = vpack.c.b16 %v1115, %v1114
    %v1446 = vpack.c.b16 %v1117, %v1116
    %v1447 = vpack.c.b16 %v1119, %v1118
    %v1448 = vpack.c.b16 %v1121, %v1120
    %v1449 = vpack.c.b16 %v1123, %v1122
    %v1450 = vpack.c.b16 %v1125, %v1124
    %v1451 = vpack.c.b16 %v1127, %v1126
    %v1452 = vpack.c.b16 %v1129, %v1128
    %v1453 = vpack.c.b16 %v1131, %v1130
    %v1454 = vpack.c.b16 %v1133, %v1132
    %v1455 = vpack.c.b16 %v1135, %v1134
    %v1456 = vpack.c.b16 %v1137, %v1136
    %v1457 = vpack.c.b16 %v1139, %v1138
    %v1458 = vpack.c.b16 %v1141, %v1140
    %v1459 = vpack.c.b16 %v1143, %v1142
    %v1460 = vpack.c.b16 %v1145, %v1144
    %v1461 = vpack.c.b16 %v1147, %v1146
    %v1462 = vpack.c.b16 %v1149, %v1148
    %v1463 = vpack.c.b16 %v1151, %v1150
    %v1464 = vpack.c.b16 %v1153, %v1152
    %v1465 = vpack.c.b16 %v1155, %v1154
    %v1466 = vpack.c.b16 %v1157, %v1156
    %v1467 = vpack.c.b16 %v1159, %v1158
    %v1468 = vpack.c.b16 %v1161, %v1160
    %v1469 = vpack.c.b16 %v1163, %v1162
    %v1470 = vpack.c.b16 %v1165, %v1164
    %v1471 = vpack.c.b16 %v1167, %v1166
    %v1472 = vpack.c.b16 %v1169, %v1168
    %v1473 = vpack.c.b16 %v1171, %v1170
    %v1474 = vpack.c.b16 %v1173, %v1172
    %v1475 = vpack.c.b16 %v1175, %v1174
    %v1476 = vpack.c.b16 %v1177, %v1176
    %v1477 = vpack.c.b16 %v1179, %v1178
    %v1478 = vpack.c.b16 %v1181, %v1180
    %v1479 = vpack.c.b16 %v1183, %v1182
    %v1480 = vpack.c.b16 %v1185, %v1184
    %v1481 = vpack.c.b16 %v1187, %v1186
    %v1482 = vpack.c.b16 %v1189, %v1188
    %v1483 = vpack.c.b16 %v1191, %v1190
    %v1484 = vpack.c.b16 %v1193, %v1192
    %v1485 = vpack.c.b16 %v1195, %v1194
    %v1486 = vpack.c.b16 %v1197, %v1196
    %v1487 = vpack.c.b16 %v1199, %v1198
    %v1488 = vpack.c.b16 %v1201, %v1200
    %v1489 = vpack.c.b16 %v1203, %v1202
    %v1490 = vpack.c.b16 %v1205, %v1204
    %v1491 = vpack.c.b16 %v1207, %v1206
    %v1492 = vpack.c.b16 %v1209, %v1208
    %v1493 = vpack.c.b16 %v1211, %v1210
    %v1494 = vpack.c.b16 %v1213, %v1212
    %v1495 = vpack.c.b16 %v1215, %v1214
    %v1496 = vpack.c.b16 %v1217, %v1216
    %v1497 = vpack.c.b16 %v1219, %v1218
    %v1498 = vpack.c.b16 %v1221, %v1220
    %v1499 = vpack.c.b16 %v1223, %v1222
    %v1500 = vpack.c.b16 %v1225, %v1224
    %v1501 = vpack.c.b16 %v1227, %v1226
    %v1502 = vpack.c.b16 %v1229, %v1228
    %v1503 = vpack.c.b16 %v1231, %v1230
    %v1504 = vpack.c.b16 %v1233, %v1232
    %v1505 = vpack.c.b16 %v1235, %v1234
    %v1506 = vpack.c.b16 %v1237, %v1236
    %v1507 = vpack.c.b16 %v1239, %v1238
    %v1508 = vpack.c.b16 %v1241, %v1240
    %v1509 = vpack.c.b16 %v1243, %v1242
    %v1510 = vpack.c.b16 %v1245, %v1244
    %v1511 = vpack.c.b16 %v1247, %v1246
    %v1512 = vpack.c.b16 %v1249, %v1248
    %v1513 = vpack.c.b16 %v1251, %v1250
    %v1514 = vpack.c.b16 %v1253, %v1252
    %v1515 = vpack.c.b16 %v1255, %v1254
    %v1516 = vpack.c.b16 %v1257, %v1256
    %v1517 = vpack.c.b16 %v1259, %v1258
    %v1518 = vpack.c.b16 %v1261, %v1260
    %v1519 = vpack.c.b16 %v1263, %v1262
    %v1520 = vpack.c.b16 %v1265, %v1264
    %v1521 = vpack.c.b16 %v1267, %v1266
    %v1522 = vpack.c.b16 %v1269, %v1268
    %v1523 = vpack.c.b16 %v1271, %v1270
    %v1524 = vpack.c.b16 %v1273, %v1272
    %v1525 = vpack.c.b16 %v1275, %v1274
    %v1526 = vpack.c.b16 %v1277, %v1276
    %v1527 = vpack.c.b16 %v1279, %v1278
    %v1528 = vpack.c.b16 %v1281, %v1280
    %v1529 = vpack.c.b16 %v1283, %v1282
    %v1530 = vpack.c.b16 %v1285, %v1284
    %v1531 = vpack.c.b16 %v1287, %v1286
    %v1532 = vpack.c.b16 %v1289, %v1288
    %v1533 = vpack.c.b16 %v1291, %v1290
    %v1534 = vpack.c.b16 %v1293, %v1292
    %v1535 = vpack.c.b16 %v1295, %v1294
    %v1536 = vpack.c.b16 %v1297, %v1296
    %v1537 = vpack.c.b16 %v1299, %v1298
    %v1538 = vpack.c.b16 %v1301, %v1300
    %v1539 = vpack.c.b16 %v1303, %v1302
    %v1540 = vpack.c.b16 %v1305, %v1304
    %v1541 = vpack.c.b16 %v1307, %v1306
    %v1542 = vpack.c.b16 %v1309, %v1308
    %v1543 = vpack.c.b16 %v1311, %v1310
    %v1544 = vpack.c.b16 %v1313, %v1312
    %v1545 = vpack.c.b16 %v1315, %v1314
    %v1546 = vpack.c.b16 %v1317, %v1316
    %v1547 = vpack.c.b16 %v1319, %v1318
    %v1548 = vpack.c.b16 %v1321, %v1320
    %v1549 = vpack.c.b16 %v1323, %v1322
    %v1550 = vpack.c.b16 %v1325, %v1324
    %v1551 = vpack.c.b16 %v1327, %v1326
    %v1552 = vpack.c.b16 %v1329, %v1328
    %v1553 = vpack.c.b16 %v1331, %v1330
    %v1554 = vpack.c.b16 %v1333, %v1332
    %v1555 = vpack.c.b16 %v1335, %v1334
    %v1556 = vpack.c.b16 %v1337, %v1336
    %v1557 = vpack.c.b16 %v1339, %v1338
    %v1558 = vpack.c.b16 %v1341, %v1340
    %v1559 = vpack.c.b16 %v1343, %v1342
    %v1560 = vpack.c.b16 %v1345, %v1344
    %v1561 = vpack.c.b16 %v1347, %v1346
    %v1562 = vpack.c.b16 %v1349, %v1348
    %v1563 = vpack.c.b16 %v1351, %v1350
    %v1564 = vpack.c.b16 %v1353, %v1352
    %v1565 = vpack.c.b16 %v1355, %v1354
    %v1566 = vpack.c.b16 %v1357, %v1356
    %v1567 = vpack.c.b16 %v1359, %v1358
    %v1568 = vpack.c.b16 %v1361, %v1360
    %v1569 = vpack.c.b16 %v1363, %v1362
    %v1570 = vpack.c.b16 %v1365, %v1364
    %v1571 = vpack.c.b16 %v1367, %v1366
    %v1572 = vpack.c.b16 %v1369, %v1368
    %v1573 = vpack.c.b16 %v1371, %v1370
    %v1574 = vpack.c.b16 %v1373, %v1372
    %v1575 = vpack.c.b16 %v1375, %v1374
    %v1576 = vpack.c.b16 %v1377, %v1376
    %v1577 = vpack.c.b16 %v1379, %v1378
    %v1578 = vpack.c.b16 %v1381, %v1380
    %v1579 = vpack.c.b16 %v1383, %v1382
    %vm1776 = vcmask 523264
    %v1778 = vsel %vm1776, %v575, 0
    %1780 = vmatpush.bf16.msra.mxu0 %v1391
    %1781 = vmatpush.bf16.msra.mxu0 %v1390
    %1782 = vmatpush.bf16.msra.mxu0 %v1389
    %1783 = vmatpush.bf16.msra.mxu0 %v1388
    %1784 = vmatpush.bf16.msra.mxu0 %v1387
    %1785 = vmatpush.bf16.msra.mxu0 %v1386
    %1786 = vmatpush.bf16.msra.mxu0 %v1385
    %1787 = vmatpush.bf16.msra.mxu0 %v1384
    %1788 = vmatmul.bf16.gmra.mxu0 %v551
    %v1789 = vpop.f32.mrf.mxu0
    %v1790 = vadd.f32 %v510, %v1789
    %v1791 = vpop.f32.mrf.mxu0
    %1792 = vdwg.mxu0
    %1793 = vmatpush.bf16.msra.mxu0 %v1399
    %1794 = vmatpush.bf16.msra.mxu0 %v1398
    %1795 = vmatpush.bf16.msra.mxu0 %v1397
    %1796 = vmatpush.bf16.msra.mxu0 %v1396
    %1797 = vmatpush.bf16.msra.mxu0 %v1395
    %1798 = vmatpush.bf16.msra.mxu0 %v1394
    %1799 = vmatpush.bf16.msra.mxu0 %v1393
    %1800 = vmatpush.bf16.msra.mxu0 %v1392
    %1801 = vmatmul.bf16.gmra.mxu0 %v552
    %v1802 = vpop.f32.mrf.mxu0
    %v1803 = vadd.f32 %v1790, %v1802
    %v1804 = vpop.f32.mrf.mxu0
    %1805 = vdwg.mxu0
    %1806 = vmatpush.bf16.msra.mxu0 %v1407
    %1807 = vmatpush.bf16.msra.mxu0 %v1406
    %1808 = vmatpush.bf16.msra.mxu0 %v1405
    %1809 = vmatpush.bf16.msra.mxu0 %v1404
    %1810 = vmatpush.bf16.msra.mxu0 %v1403
    %1811 = vmatpush.bf16.msra.mxu0 %v1402
    %1812 = vmatpush.bf16.msra.mxu0 %v1401
    %1813 = vmatpush.bf16.msra.mxu0 %v1400
    %1814 = vmatmul.bf16.gmra.mxu0 %v553
    %v1815 = vpop.f32.mrf.mxu0
    %v1816 = vadd.f32 %v1803, %v1815
    %v1817 = vpop.f32.mrf.mxu0
    %1818 = vdwg.mxu0
    %1819 = vmatpush.bf16.msra.mxu0 %v1415
    %1820 = vmatpush.bf16.msra.mxu0 %v1414
    %1821 = vmatpush.bf16.msra.mxu0 %v1413
    %1822 = vmatpush.bf16.msra.mxu0 %v1412
    %1823 = vmatpush.bf16.msra.mxu0 %v1411
    %1824 = vmatpush.bf16.msra.mxu0 %v1410
    %1825 = vmatpush.bf16.msra.mxu0 %v1409
    %1826 = vmatpush.bf16.msra.mxu0 %v1408
    %1827 = vmatmul.bf16.gmra.mxu0 %v554
    %v1828 = vpop.f32.mrf.mxu0
    %v1829 = vadd.f32 %v1816, %v1828
    %v1830 = vpop.f32.mrf.mxu0
    %1831 = vdwg.mxu0
    %1832 = vmatpush.bf16.msra.mxu0 %v1423
    %1833 = vmatpush.bf16.msra.mxu0 %v1422
    %1834 = vmatpush.bf16.msra.mxu0 %v1421
    %1835 = vmatpush.bf16.msra.mxu0 %v1420
    %1836 = vmatpush.bf16.msra.mxu0 %v1419
    %1837 = vmatpush.bf16.msra.mxu0 %v1418
    %1838 = vmatpush.bf16.msra.mxu0 %v1417
    %1839 = vmatpush.bf16.msra.mxu0 %v1416
    %1840 = vmatmul.bf16.gmra.mxu0 %v555
    %v1841 = vpop.f32.mrf.mxu0
    %v1842 = vadd.f32 %v1829, %v1841
    %v1843 = vpop.f32.mrf.mxu0
    %1844 = vdwg.mxu0
    %1845 = vmatpush.bf16.msra.mxu0 %v1431
    %1846 = vmatpush.bf16.msra.mxu0 %v1430
    %1847 = vmatpush.bf16.msra.mxu0 %v1429
    %1848 = vmatpush.bf16.msra.mxu0 %v1428
    %1849 = vmatpush.bf16.msra.mxu0 %v1427
    %1850 = vmatpush.bf16.msra.mxu0 %v1426
    %1851 = vmatpush.bf16.msra.mxu0 %v1425
    %1852 = vmatpush.bf16.msra.mxu0 %v1424
    %1853 = vmatmul.bf16.gmra.mxu0 %v556
    %v1854 = vpop.f32.mrf.mxu0
    %v1855 = vadd.f32 %v1842, %v1854
    %v1856 = vpop.f32.mrf.mxu0
    %1857 = vdwg.mxu0
    %1858 = vmatpush.bf16.msra.mxu0 %v1439
    %1859 = vmatpush.bf16.msra.mxu0 %v1438
    %1860 = vmatpush.bf16.msra.mxu0 %v1437
    %1861 = vmatpush.bf16.msra.mxu0 %v1436
    %1862 = vmatpush.bf16.msra.mxu0 %v1435
    %1863 = vmatpush.bf16.msra.mxu0 %v1434
    %1864 = vmatpush.bf16.msra.mxu0 %v1433
    %1865 = vmatpush.bf16.msra.mxu0 %v1432
    %1866 = vmatmul.bf16.gmra.mxu0 %v557
    %v1867 = vpop.f32.mrf.mxu0
    %v1868 = vadd.f32 %v1855, %v1867
    %v1869 = vpop.f32.mrf.mxu0
    %1870 = vdwg.mxu0
    %1871 = vmatpush.bf16.msra.mxu0 %v1447
    %1872 = vmatpush.bf16.msra.mxu0 %v1446
    %1873 = vmatpush.bf16.msra.mxu0 %v1445
    %1874 = vmatpush.bf16.msra.mxu0 %v1444
    %1875 = vmatpush.bf16.msra.mxu0 %v1443
    %1876 = vmatpush.bf16.msra.mxu0 %v1442
    %1877 = vmatpush.bf16.msra.mxu0 %v1441
    %1878 = vmatpush.bf16.msra.mxu0 %v1440
    %1879 = vmatmul.bf16.gmra.mxu0 %v558
    %v1880 = vpop.f32.mrf.mxu0
    %v1881 = vadd.f32 %v1868, %v1880
    %v1882 = vpop.f32.mrf.mxu0
    %1883 = vdwg.mxu0
    %1884 = vmatpush.bf16.msra.mxu0 %v1455
    %1885 = vmatpush.bf16.msra.mxu0 %v1454
    %1886 = vmatpush.bf16.msra.mxu0 %v1453
    %1887 = vmatpush.bf16.msra.mxu0 %v1452
    %1888 = vmatpush.bf16.msra.mxu0 %v1451
    %1889 = vmatpush.bf16.msra.mxu0 %v1450
    %1890 = vmatpush.bf16.msra.mxu0 %v1449
    %1891 = vmatpush.bf16.msra.mxu0 %v1448
    %1892 = vmatmul.bf16.gmra.mxu0 %v559
    %v1893 = vpop.f32.mrf.mxu0
    %v1894 = vadd.f32 %v1881, %v1893
    %v1895 = vpop.f32.mrf.mxu0
    %1896 = vdwg.mxu0
    %1897 = vmatpush.bf16.msra.mxu0 %v1463
    %1898 = vmatpush.bf16.msra.mxu0 %v1462
    %1899 = vmatpush.bf16.msra.mxu0 %v1461
    %1900 = vmatpush.bf16.msra.mxu0 %v1460
    %1901 = vmatpush.bf16.msra.mxu0 %v1459
    %1902 = vmatpush.bf16.msra.mxu0 %v1458
    %1903 = vmatpush.bf16.msra.mxu0 %v1457
    %1904 = vmatpush.bf16.msra.mxu0 %v1456
    %1905 = vmatmul.bf16.gmra.mxu0 %v560
    %v1906 = vpop.f32.mrf.mxu0
    %v1907 = vadd.f32 %v1894, %v1906
    %v1908 = vpop.f32.mrf.mxu0
    %1909 = vdwg.mxu0
    %1910 = vmatpush.bf16.msra.mxu0 %v1471
    %1911 = vmatpush.bf16.msra.mxu0 %v1470
    %1912 = vmatpush.bf16.msra.mxu0 %v1469
    %1913 = vmatpush.bf16.msra.mxu0 %v1468
    %1914 = vmatpush.bf16.msra.mxu0 %v1467
    %1915 = vmatpush.bf16.msra.mxu0 %v1466
    %1916 = vmatpush.bf16.msra.mxu0 %v1465
    %1917 = vmatpush.bf16.msra.mxu0 %v1464
    %1918 = vmatmul.bf16.gmra.mxu0 %v561
    %v1919 = vpop.f32.mrf.mxu0
    %v1920 = vadd.f32 %v1907, %v1919
    %v1921 = vpop.f32.mrf.mxu0
    %1922 = vdwg.mxu0
    %1923 = vmatpush.bf16.msra.mxu0 %v1479
    %1924 = vmatpush.bf16.msra.mxu0 %v1478
    %1925 = vmatpush.bf16.msra.mxu0 %v1477
    %1926 = vmatpush.bf16.msra.mxu0 %v1476
    %1927 = vmatpush.bf16.msra.mxu0 %v1475
    %1928 = vmatpush.bf16.msra.mxu0 %v1474
    %1929 = vmatpush.bf16.msra.mxu0 %v1473
    %1930 = vmatpush.bf16.msra.mxu0 %v1472
    %1931 = vmatmul.bf16.gmra.mxu0 %v562
    %v1932 = vpop.f32.mrf.mxu0
    %v1933 = vadd.f32 %v1920, %v1932
    %v1934 = vpop.f32.mrf.mxu0
    %1935 = vdwg.mxu0
    %1936 = vmatpush.bf16.msra.mxu0 %v1487
    %1937 = vmatpush.bf16.msra.mxu0 %v1486
    %1938 = vmatpush.bf16.msra.mxu0 %v1485
    %1939 = vmatpush.bf16.msra.mxu0 %v1484
    %1940 = vmatpush.bf16.msra.mxu0 %v1483
    %1941 = vmatpush.bf16.msra.mxu0 %v1482
    %1942 = vmatpush.bf16.msra.mxu0 %v1481
    %1943 = vmatpush.bf16.msra.mxu0 %v1480
    %1944 = vmatmul.bf16.gmra.mxu0 %v563
    %v1945 = vpop.f32.mrf.mxu0
    %v1946 = vadd.f32 %v1933, %v1945
    %v1947 = vpop.f32.mrf.mxu0
    %1948 = vdwg.mxu0
    %1949 = vmatpush.bf16.msra.mxu0 %v1495
    %1950 = vmatpush.bf16.msra.mxu0 %v1494
    %1951 = vmatpush.bf16.msra.mxu0 %v1493
    %1952 = vmatpush.bf16.msra.mxu0 %v1492
    %1953 = vmatpush.bf16.msra.mxu0 %v1491
    %1954 = vmatpush.bf16.msra.mxu0 %v1490
    %1955 = vmatpush.bf16.msra.mxu0 %v1489
    %1956 = vmatpush.bf16.msra.mxu0 %v1488
    %1957 = vmatmul.bf16.gmra.mxu0 %v564
    %v1958 = vpop.f32.mrf.mxu0
    %v1959 = vadd.f32 %v1946, %v1958
    %v1960 = vpop.f32.mrf.mxu0
    %1961 = vdwg.mxu0
    %1962 = vmatpush.bf16.msra.mxu0 %v1503
    %1963 = vmatpush.bf16.msra.mxu0 %v1502
    %1964 = vmatpush.bf16.msra.mxu0 %v1501
    %1965 = vmatpush.bf16.msra.mxu0 %v1500
    %1966 = vmatpush.bf16.msra.mxu0 %v1499
    %1967 = vmatpush.bf16.msra.mxu0 %v1498
    %1968 = vmatpush.bf16.msra.mxu0 %v1497
    %1969 = vmatpush.bf16.msra.mxu0 %v1496
    %1970 = vmatmul.bf16.gmra.mxu0 %v565
    %v1971 = vpop.f32.mrf.mxu0
    %v1972 = vadd.f32 %v1959, %v1971
    %v1973 = vpop.f32.mrf.mxu0
    %1974 = vdwg.mxu0
    %1975 = vmatpush.bf16.msra.mxu0 %v1511
    %1976 = vmatpush.bf16.msra.mxu0 %v1510
    %1977 = vmatpush.bf16.msra.mxu0 %v1509
    %1978 = vmatpush.bf16.msra.mxu0 %v1508
    %1979 = vmatpush.bf16.msra.mxu0 %v1507
    %1980 = vmatpush.bf16.msra.mxu0 %v1506
    %1981 = vmatpush.bf16.msra.mxu0 %v1505
    %1982 = vmatpush.bf16.msra.mxu0 %v1504
    %1983 = vmatmul.bf16.gmra.mxu0 %v566
    %v1984 = vpop.f32.mrf.mxu0
    %v1985 = vadd.f32 %v1972, %v1984
    %v1986 = vpop.f32.mrf.mxu0
    %1987 = vdwg.mxu0
    %1988 = vmatpush.bf16.msra.mxu0 %v1519
    %1989 = vmatpush.bf16.msra.mxu0 %v1518
    %1990 = vmatpush.bf16.msra.mxu0 %v1517
    %1991 = vmatpush.bf16.msra.mxu0 %v1516
    %1992 = vmatpush.bf16.msra.mxu0 %v1515
    %1993 = vmatpush.bf16.msra.mxu0 %v1514
    %1994 = vmatpush.bf16.msra.mxu0 %v1513
    %1995 = vmatpush.bf16.msra.mxu0 %v1512
    %1996 = vmatmul.bf16.gmra.mxu0 %v567
    %v1997 = vpop.f32.mrf.mxu0
    %v1998 = vadd.f32 %v1985, %v1997
    %v1999 = vpop.f32.mrf.mxu0
    %2000 = vdwg.mxu0
    %2001 = vmatpush.bf16.msra.mxu0 %v1527
    %2002 = vmatpush.bf16.msra.mxu0 %v1526
    %2003 = vmatpush.bf16.msra.mxu0 %v1525
    %2004 = vmatpush.bf16.msra.mxu0 %v1524
    %2005 = vmatpush.bf16.msra.mxu0 %v1523
    %2006 = vmatpush.bf16.msra.mxu0 %v1522
    %2007 = vmatpush.bf16.msra.mxu0 %v1521
    %2008 = vmatpush.bf16.msra.mxu0 %v1520
    %2009 = vmatmul.bf16.gmra.mxu0 %v568
    %v2010 = vpop.f32.mrf.mxu0
    %v2011 = vadd.f32 %v1998, %v2010
    %v2012 = vpop.f32.mrf.mxu0
    %2013 = vdwg.mxu0
    %2014 = vmatpush.bf16.msra.mxu0 %v1535
    %2015 = vmatpush.bf16.msra.mxu0 %v1534
    %2016 = vmatpush.bf16.msra.mxu0 %v1533
    %2017 = vmatpush.bf16.msra.mxu0 %v1532
    %2018 = vmatpush.bf16.msra.mxu0 %v1531
    %2019 = vmatpush.bf16.msra.mxu0 %v1530
    %2020 = vmatpush.bf16.msra.mxu0 %v1529
    %2021 = vmatpush.bf16.msra.mxu0 %v1528
    %2022 = vmatmul.bf16.gmra.mxu0 %v569
    %v2023 = vpop.f32.mrf.mxu0
    %v2024 = vadd.f32 %v2011, %v2023
    %v2025 = vpop.f32.mrf.mxu0
    %2026 = vdwg.mxu0
    %2027 = vmatpush.bf16.msra.mxu0 %v1543
    %2028 = vmatpush.bf16.msra.mxu0 %v1542
    %2029 = vmatpush.bf16.msra.mxu0 %v1541
    %2030 = vmatpush.bf16.msra.mxu0 %v1540
    %2031 = vmatpush.bf16.msra.mxu0 %v1539
    %2032 = vmatpush.bf16.msra.mxu0 %v1538
    %2033 = vmatpush.bf16.msra.mxu0 %v1537
    %2034 = vmatpush.bf16.msra.mxu0 %v1536
    %2035 = vmatmul.bf16.gmra.mxu0 %v570
    %v2036 = vpop.f32.mrf.mxu0
    %v2037 = vadd.f32 %v2024, %v2036
    %v2038 = vpop.f32.mrf.mxu0
    %2039 = vdwg.mxu0
    %2040 = vmatpush.bf16.msra.mxu0 %v1551
    %2041 = vmatpush.bf16.msra.mxu0 %v1550
    %2042 = vmatpush.bf16.msra.mxu0 %v1549
    %2043 = vmatpush.bf16.msra.mxu0 %v1548
    %2044 = vmatpush.bf16.msra.mxu0 %v1547
    %2045 = vmatpush.bf16.msra.mxu0 %v1546
    %2046 = vmatpush.bf16.msra.mxu0 %v1545
    %2047 = vmatpush.bf16.msra.mxu0 %v1544
    %2048 = vmatmul.bf16.gmra.mxu0 %v571
    %v2049 = vpop.f32.mrf.mxu0
    %v2050 = vadd.f32 %v2037, %v2049
    %v2051 = vpop.f32.mrf.mxu0
    %2052 = vdwg.mxu0
    %2053 = vmatpush.bf16.msra.mxu0 %v1559
    %2054 = vmatpush.bf16.msra.mxu0 %v1558
    %2055 = vmatpush.bf16.msra.mxu0 %v1557
    %2056 = vmatpush.bf16.msra.mxu0 %v1556
    %2057 = vmatpush.bf16.msra.mxu0 %v1555
    %2058 = vmatpush.bf16.msra.mxu0 %v1554
    %2059 = vmatpush.bf16.msra.mxu0 %v1553
    %2060 = vmatpush.bf16.msra.mxu0 %v1552
    %2061 = vmatmul.bf16.gmra.mxu0 %v572
    %v2062 = vpop.f32.mrf.mxu0
    %v2063 = vadd.f32 %v2050, %v2062
    %v2064 = vpop.f32.mrf.mxu0
    %2065 = vdwg.mxu0
    %2066 = vmatpush.bf16.msra.mxu0 %v1567
    %2067 = vmatpush.bf16.msra.mxu0 %v1566
    %2068 = vmatpush.bf16.msra.mxu0 %v1565
    %2069 = vmatpush.bf16.msra.mxu0 %v1564
    %2070 = vmatpush.bf16.msra.mxu0 %v1563
    %2071 = vmatpush.bf16.msra.mxu0 %v1562
    %2072 = vmatpush.bf16.msra.mxu0 %v1561
    %2073 = vmatpush.bf16.msra.mxu0 %v1560
    %2074 = vmatmul.bf16.gmra.mxu0 %v573
    %v2075 = vpop.f32.mrf.mxu0
    %v2076 = vadd.f32 %v2063, %v2075
    %v2077 = vpop.f32.mrf.mxu0
    %2078 = vdwg.mxu0
    %2079 = vmatpush.bf16.msra.mxu0 %v1575
    %2080 = vmatpush.bf16.msra.mxu0 %v1574
    %2081 = vmatpush.bf16.msra.mxu0 %v1573
    %2082 = vmatpush.bf16.msra.mxu0 %v1572
    %2083 = vmatpush.bf16.msra.mxu0 %v1571
    %2084 = vmatpush.bf16.msra.mxu0 %v1570
    %2085 = vmatpush.bf16.msra.mxu0 %v1569
    %2086 = vmatpush.bf16.msra.mxu0 %v1568
    %2087 = vmatmul.bf16.gmra.mxu0 %v574
    %v2088 = vpop.f32.mrf.mxu0
    %v2089 = vadd.f32 %v2076, %v2088
    %v2090 = vpop.f32.mrf.mxu0
    %2091 = vdwg.mxu0
    %2092 = vmatpush.bf16.msra.mxu0 0
    %2093 = vmatpush.bf16.msra.mxu0 0
    %2094 = vmatpush.bf16.msra.mxu0 0
    %2095 = vmatpush.bf16.msra.mxu0 0
    %2096 = vmatpush.bf16.msra.mxu0 %v1579
    %2097 = vmatpush.bf16.msra.mxu0 %v1578
    %2098 = vmatpush.bf16.msra.mxu0 %v1577
    %2099 = vmatpush.bf16.msra.mxu0 %v1576
    %2100 = vmatmul.bf16.gmra.mxu0 %v1778
    %v2101 = vpop.f32.mrf.mxu0
    %v2102 = vadd.f32 %v2089, %v2101
    %v2103 = vpop.f32.mrf.mxu0
    %2104 = vdwg.mxu0
    %v2105 = vld [vmem:[#allocation7] sm:$0x1]
    %v2107 = vperm.slane %v2105, 0
    %v2109 = vadd.f32 %v2102, %v2107
    %v2110 = vmax.f32 %v2109, 0.0
    %v2111 = vpack.c.bf16 %v2110, %v2110
    %v2112 = vld [vmem:[%s5] sm:$0xf]
    %v2113 = vld [vmem:[%s5 + $0x4] sm:$0xf]
    %v2114 = vld [vmem:[%s5 + $0x8] sm:$0xf]
    %v2115 = vld [vmem:[%s5 + $0xc] sm:$0xf]
    %v2116 = vld [vmem:[%s5 + $0x10] sm:$0xf]
    %v2117 = vld [vmem:[%s5 + $0x14] sm:$0xf]
    %v2118 = vld [vmem:[%s5 + $0x18] sm:$0xf]
    %v2119 = vld [vmem:[%s5 + $0x1c] sm:$0xf]
    %v2120 = vld [vmem:[%s5 + $0x20] sm:$0xf]
    %v2121 = vld [vmem:[%s5 + $0x24] sm:$0xf]
    %v2122 = vld [vmem:[%s5 + $0x28] sm:$0xf]
    %v2123 = vld [vmem:[%s5 + $0x2c] sm:$0xf]
    %v2124 = vld [vmem:[%s5 + $0x30] sm:$0xf]
    %v2125 = vld [vmem:[%s5 + $0x34] sm:$0xf]
    %v2126 = vld [vmem:[%s5 + $0x38] sm:$0xf]
    %v2127 = vld [vmem:[%s5 + $0x3c] sm:$0xf]
    %v2128 = vld [vmem:[%s6] sm:$0x1]
    %v2130 = vperm.slane %v2128, 0
    %v2148 = vunpack.c.l.b16 %v2112
    %v2149 = vunpack.c.l.b16 %v2113
    %v2150 = vunpack.c.l.b16 %v2114
    %v2151 = vunpack.c.l.b16 %v2115
    %v2152 = vunpack.c.l.b16 %v2116
    %v2153 = vunpack.c.l.b16 %v2117
    %v2154 = vunpack.c.l.b16 %v2118
    %v2155 = vunpack.c.l.b16 %v2119
    %v2156 = vunpack.c.l.b16 %v2120
    %v2157 = vunpack.c.l.b16 %v2121
    %v2158 = vunpack.c.l.b16 %v2122
    %v2159 = vunpack.c.l.b16 %v2123
    %v2160 = vunpack.c.l.b16 %v2124
    %v2161 = vunpack.c.l.b16 %v2125
    %v2162 = vunpack.c.l.b16 %v2126
    %v2163 = vunpack.c.l.b16 %v2127
    %v2164 = vpack.c.b16 %v2149, %v2148
    %v2165 = vpack.c.b16 %v2151, %v2150
    %v2166 = vpack.c.b16 %v2153, %v2152
    %v2167 = vpack.c.b16 %v2155, %v2154
    %v2168 = vpack.c.b16 %v2157, %v2156
    %v2169 = vpack.c.b16 %v2159, %v2158
    %v2170 = vpack.c.b16 %v2161, %v2160
    %v2171 = vpack.c.b16 %v2163, %v2162
    %2180 = vmatpush.bf16.msra.mxu0 %v2171
    %2181 = vmatpush.bf16.msra.mxu0 %v2170
    %2182 = vmatpush.bf16.msra.mxu0 %v2169
    %2183 = vmatpush.bf16.msra.mxu0 %v2168
    %2184 = vmatpush.bf16.msra.mxu0 %v2167
    %2185 = vmatpush.bf16.msra.mxu0 %v2166
    %2186 = vmatpush.bf16.msra.mxu0 %v2165
    %2187 = vmatpush.bf16.msra.mxu0 %v2164
    %2188 = vmatmul.bf16.gmra.mxu0 %v2111
    %v2189 = vpop.f32.mrf.mxu0
    %v2190 = vadd.f32 %v2130, %v2189
    %v2191 = vpop.f32.mrf.mxu0
    %2192 = vdwg.mxu0
    %v2193 = vmax.f32 %v2190, 0.0
    %v2194 = vpack.c.bf16 %v2193, %v2193
    %v2195 = vld [vmem:[%s7] sm:$0xf]
    %v2196 = vld [vmem:[%s7 + $0x4] sm:$0xf]
    %v2197 = vld [vmem:[%s7 + $0x8] sm:$0xf]
    %v2198 = vld [vmem:[%s7 + $0xc] sm:$0xf]
    %v2199 = vld [vmem:[%s7 + $0x10] sm:$0xf]
    %v2200 = vld [vmem:[%s7 + $0x14] sm:$0xf]
    %v2201 = vld [vmem:[%s7 + $0x18] sm:$0xf]
    %v2202 = vld [vmem:[%s7 + $0x1c] sm:$0xf]
    %v2203 = vld [vmem:[%s8] sm:$0x1]
    %v2205 = vperm.slane %v2203, 0
    %v2215 = vunpack.c.l.b16 %v2195
    %v2216 = vunpack.c.l.b16 %v2196
    %v2217 = vunpack.c.l.b16 %v2197
    %v2218 = vunpack.c.l.b16 %v2198
    %v2219 = vunpack.c.l.b16 %v2199
    %v2220 = vunpack.c.l.b16 %v2200
    %v2221 = vunpack.c.l.b16 %v2201
    %v2222 = vunpack.c.l.b16 %v2202
    %v2223 = vpack.c.b16 %v2216, %v2215
    %v2224 = vpack.c.b16 %v2218, %v2217
    %v2225 = vpack.c.b16 %v2220, %v2219
    %v2226 = vpack.c.b16 %v2222, %v2221
    %v2232 = vsel %vm1776, %v2194, 0
    %2234 = vmatpush.bf16.msra.mxu0 0
    %2235 = vmatpush.bf16.msra.mxu0 0
    %2236 = vmatpush.bf16.msra.mxu0 0
    %2237 = vmatpush.bf16.msra.mxu0 0
    %2238 = vmatpush.bf16.msra.mxu0 %v2226
    %2239 = vmatpush.bf16.msra.mxu0 %v2225
    %2240 = vmatpush.bf16.msra.mxu0 %v2224
    %2241 = vmatpush.bf16.msra.mxu0 %v2223
    %2242 = vmatmul.bf16.gmra.mxu0 %v2232
    %v2243 = vpop.f32.mrf.mxu0
    %v2244 = vadd.f32 %v2205, %v2243
    %v2245 = vpop.f32.mrf.mxu0
    %2246 = vdwg.mxu0
    %2248 = vrot.lane.b32.xlu0 %v2244, 124
    %v2249 = vpop.permute.xlu0 %2248
    %v2251 = vmax.f32 %v2244, %v2249
    %v2252 = vsub.f32 %v2244, %v2251
    %v2253 = vmul.f32 %v2252, 1.442695
    %v2254 = vpow.pop %v2253
    %2256 = vrot.lane.b32.xlu0 %v2251, 4
    %v2257 = vpop.permute.xlu0 %2256
    %v2259 = vsub.f32 %v2244, %v2257
    %v2260 = vmul.f32 %v2259, 1.442695
    %v2261 = vpow.pop %v2260
    %2263 = vrot.lane.b32.xlu0 %v2261, 124
    %v2264 = vpop.permute.xlu0 %2263
    %v2266 = vadd.f32 %v2254, %v2264
    %v2267 = vrcp.pop %v2266
    %v2268 = vmul.f32 %v2254, %v2267
    %vm2269 = vcmask 31744
    %2270 = vst.msk [vmem:[#allocation8] sm:$0xff] %vm2269, %v2268
    %2272 = vrot.lane.b32.xlu0 %v2267, 4
    %v2273 = vpop.permute.xlu0 %2272
    %v2275 = vmul.f32 %v2261, %v2273
    %vm2276 = vcmask 64544
    %2277 = vst.msk [vmem:[#allocation8] sm:$0xff] %vm2276, %v2275
    // Predicated region
    $region50: #{tpu_custom_call.1} parent=1 // pred_check
      _
    $region51: #{tpu_custom_call.1} parent=1 // pred_check_branch
      %2279 = sbr.rel (0) target = $region53
    $region52: #{tpu_custom_call.1} parent=1 // pred_region
      %2281 = vsyncadd [#allocation4], 0
      %s2283 = sshll.u32 [#allocation8], 4
      %s2284 = int_to_ptr.vmem [resolvable:$true] %s2283
      %s2285 = sshll.u32 %s9, 4
      %s2286 = int_to_ptr.hbm [resolvable:$true] %s2285
      %2288 = dma.vmem_to_hbm [thread:$0]  %s2284, 128, %s2286, [#allocation4]
    $region53: #{tpu_custom_call.1} parent=1 // pred_fallthru
      _
    // Predicated region
    $region54: #{tpu_custom_call.1} parent=1 // pred_check
      _
    $region55: #{tpu_custom_call.1} parent=1 // pred_check_branch
      %2290 = sbr.rel (0) target = $region57
    $region56: #{tpu_custom_call.1} parent=1 // pred_region
      %2292 = dma.done [#allocation4], 128
    $region57: #{tpu_custom_call.1} parent=1 // pred_fallthru
      _
    %2293 = vsyncpa [#allocation3], 1
    %2294 = vsyncpa [#allocation6], 1
    %2295 = vsyncpa [#allocation4], 1

</llo_original>
